<compile_context>
chip_gen: v5e
topology: v5e:2x2
jax: 0.10.0
libtpu: 0.0.40
codegen_flags: <defaults>
</compile_context>

<pallas_src>
import functools
import numpy as np
import jax
import jax.numpy as jnp
from jax import lax
from jax.experimental import pallas as pl
from jax.experimental.pallas import tpu as pltpu

# ---- module-level constants (as in the reference repo) -----------------------------
NUM_VIEW = 300
NUM_ANGLE = 12
NUM_DEPTH = 4
GRASPNESS_THRESHOLD = 0.1
M_POINT = 2048  # original constant; the small test below uses a scaled-down m_points

_VMEM_LIMIT = 32 * 1024 * 1024  # explicit scoped-VMEM budget (>= v6e/v7x default, > v5e)


def _cparams(n_axes=2):
    return pltpu.CompilerParams(
        dimension_semantics=("parallel",) * n_axes,
        vmem_limit_bytes=_VMEM_LIMIT,
    )


def _round_up(x, m):
    return ((x + m - 1) // m) * m


def _row_tile(n, target):
    """Largest multiple-of-8 divisor of n that is <= target (falls back to full n)."""
    if n <= target:
        return n
    t = (target // 8) * 8
    while t >= 8:
        if n % t == 0:
            return t
        t -= 8
    return n


# ======================= Pallas kernels =============================================
def _backbone_graspable_kernel(x_ref, bw_ref, bb_ref, gw_ref, gb_ref, feat_ref, grasp_ref):
    """Backbone stand-in (3 -> C, ReLU) fused with the GraspableNet head (C -> 128pad)."""
    x = x_ref[0].astype(jnp.bfloat16)                                   # (T, 3)
    f = jnp.dot(x, bw_ref[...], preferred_element_type=jnp.float32) + bb_ref[...]
    f = jnp.maximum(f, 0.0)                                             # (T, C) f32
    g = jnp.dot(f.astype(jnp.bfloat16), gw_ref[...],
                preferred_element_type=jnp.float32) + gb_ref[...]       # (T, 128)
    feat_ref[0] = f.astype(feat_ref.dtype)
    grasp_ref[0] = g.astype(grasp_ref.dtype)


def backbone_graspable(feats, bw, bb, gw, gb, *, tile_n=1024):
    B, N, Cin = feats.shape
    C = bw.shape[1]
    Gp = gw.shape[1]
    T = _row_tile(N, tile_n)
    return pl.pallas_call(
        _backbone_graspable_kernel,
        out_shape=(jax.ShapeDtypeStruct((B, N, C), jnp.float32),
                   jax.ShapeDtypeStruct((B, N, Gp), jnp.float32)),
        grid=(B, N // T),
        in_specs=[
            pl.BlockSpec((1, T, Cin), lambda i, j: (i, j, 0)),
            pl.BlockSpec((Cin, C), lambda i, j: (0, 0)),
            pl.BlockSpec((1, C), lambda i, j: (0, 0)),
            pl.BlockSpec((C, Gp), lambda i, j: (0, 0)),
            pl.BlockSpec((1, Gp), lambda i, j: (0, 0)),
        ],
        out_specs=(pl.BlockSpec((1, T, C), lambda i, j: (i, j, 0)),
                   pl.BlockSpec((1, T, Gp), lambda i, j: (i, j, 0))),
        compiler_params=_cparams(2),
    )(feats, bw, bb, gw, gb)


def _qkv_kernel(x_ref, w_ref, b_ref, q_ref, kv_ref):
    """Fused QKV projection; emits q and [k|v] separately in bf16 (lane-dense 3C output)."""
    x = x_ref[0].astype(jnp.bfloat16)                                   # (T, C)
    y = jnp.dot(x, w_ref[...], preferred_element_type=jnp.float32) + b_ref[...]
    C = q_ref.shape[-1]
    q_ref[0] = y[:, :C].astype(q_ref.dtype)
    kv_ref[0] = y[:, C:].astype(kv_ref.dtype)


def qkv_projection(x, w, b, *, tile_n=512):
    B, M, C = x.shape
    C3 = w.shape[1]
    T = _row_tile(M, tile_n)
    return pl.pallas_call(
        _qkv_kernel,
        out_shape=(jax.ShapeDtypeStruct((B, M, C), jnp.bfloat16),
                   jax.ShapeDtypeStruct((B, M, 2 * C), jnp.bfloat16)),
        grid=(B, M // T),
        in_specs=[
            pl.BlockSpec((1, T, C), lambda i, j: (i, j, 0)),
            pl.BlockSpec((C, C3), lambda i, j: (0, 0)),
            pl.BlockSpec((1, C3), lambda i, j: (0, 0)),
        ],
        out_specs=(pl.BlockSpec((1, T, C), lambda i, j: (i, j, 0)),
                   pl.BlockSpec((1, T, 2 * C), lambda i, j: (i, j, 0))),
        compiler_params=_cparams(2),
    )(x, w, b)


def _attn_kernel(q_ref, kv_ref, x_ref, wo_ref, bo_ref, out_ref, attn_ref, *, num_heads):
    """Query-tiled multi-head self-attention + residual + head-averaged attention map.

    Per head: scores -> softmax -> (p @ v) -> accumulate out-projection slice, so no
    concatenate / extra (TQ, C) copy is materialized."""
    q = q_ref[0]                                   # (TQ, C) bf16
    kv = kv_ref[0]                                 # (M, 2C) bf16
    x = x_ref[0]                                   # (TQ, C) f32
    TQ, C = q.shape
    M = kv.shape[0]
    dh = C // num_heads
    scale = 1.0 / float(np.sqrt(dh))

    o_acc = jnp.zeros((TQ, C), jnp.float32)
    attn_acc = jnp.zeros((TQ, M), jnp.float32)
    for h in range(num_heads):
        qh = q[:, h * dh:(h + 1) * dh]
        kh = kv[:, h * dh:(h + 1) * dh]
        vh = kv[:, C + h * dh:C + (h + 1) * dh]
        s = lax.dot_general(qh, kh, (((1,), (1,)), ((), ())),
                            preferred_element_type=jnp.float32) * scale   # (TQ, M)
        s = s - jnp.max(s, axis=-1, keepdims=True)
        p = jnp.exp(s)
        pn = p * pl.reciprocal(jnp.sum(p, axis=-1, keepdims=True), approx=True)
        attn_acc = attn_acc + pn
        oh = jnp.dot(pn.astype(jnp.bfloat16), vh,
                     preferred_element_type=jnp.float32)                  # (TQ, dh)
        o_acc = o_acc + jnp.dot(oh.astype(jnp.bfloat16),
                                wo_ref[h * dh:(h + 1) * dh, :],
                                preferred_element_type=jnp.float32)       # (TQ, C)

    out_ref[0] = (x + o_acc + bo_ref[...]).astype(out_ref.dtype)          # residual
    attn_ref[0] = (attn_acc * (1.0 / num_heads)).astype(attn_ref.dtype)


def relation_attention(x, p, num_heads, *, tile_q=128):
    """RelationNet core: residual multi-head self-attention.  x: (B, M, C) f32."""
    # TODO(synk): exact RelationNet internals (FFN / LayerNorm stack) are not given in the
    # reference snippet; implemented as MHA + residual returning the head-averaged attn map.
    B, M, C = x.shape
    q, kv = qkv_projection(x, p["rel_qkv_w"], p["rel_qkv_b"])
    TQ = _row_tile(M, tile_q)
    return pl.pallas_call(
        functools.partial(_attn_kernel, num_heads=num_heads),
        out_shape=(jax.ShapeDtypeStruct((B, M, C), jnp.float32),
                   jax.ShapeDtypeStruct((B, M, M), jnp.float32)),
        grid=(B, M // TQ),
        in_specs=[
            pl.BlockSpec((1, TQ, C), lambda i, j: (i, j, 0)),        # q tile
            pl.BlockSpec((1, M, 2 * C), lambda i, j: (i, 0, 0)),     # full K|V (resident)
            pl.BlockSpec((1, TQ, C), lambda i, j: (i, j, 0)),        # x tile (residual)
            pl.BlockSpec((C, C), lambda i, j: (0, 0)),               # wo
            pl.BlockSpec((1, C), lambda i, j: (0, 0)),               # bo
        ],
        out_specs=(pl.BlockSpec((1, TQ, C), lambda i, j: (i, j, 0)),
                   pl.BlockSpec((1, TQ, M), lambda i, j: (i, j, 0))),
        compiler_params=_cparams(2),
    )(q, kv, x, p["rel_o_w"], p["rel_o_b"])


def _approach_kernel(x_ref, w1_ref, b1_ref, w2_ref, b2_ref, feat_ref, score_ref):
    """ApproachNet conv1(ReLU) + conv2 fused, plus the residual add x + res_feat."""
    x = x_ref[0]                                                        # (T, C) f32
    res = jnp.dot(x.astype(jnp.bfloat16), w1_ref[...],
                  preferred_element_type=jnp.float32) + b1_ref[...]
    res = jnp.maximum(res, 0.0)
    score = jnp.dot(res.astype(jnp.bfloat16), w2_ref[...],
                    preferred_element_type=jnp.float32) + b2_ref[...]   # (T, Vpad)
    feat_ref[0] = (x + res).astype(feat_ref.dtype)
    score_ref[0] = score.astype(score_ref.dtype)


def approach_net(x, w1, b1, w2, b2, *, tile_m=512):
    B, M, C = x.shape
    Vp = w2.shape[1]
    T = _row_tile(M, tile_m)
    return pl.pallas_call(
        _approach_kernel,
        out_shape=(jax.ShapeDtypeStruct((B, M, C), jnp.float32),
                   jax.ShapeDtypeStruct((B, M, Vp), jnp.float32)),
        grid=(B, M // T),
        in_specs=[
            pl.BlockSpec((1, T, C), lambda i, j: (i, j, 0)),
            pl.BlockSpec((C, C), lambda i, j: (0, 0)),
            pl.BlockSpec((1, C), lambda i, j: (0, 0)),
            pl.BlockSpec((C, Vp), lambda i, j: (0, 0)),
            pl.BlockSpec((1, Vp), lambda i, j: (0, 0)),
        ],
        out_specs=(pl.BlockSpec((1, T, C), lambda i, j: (i, j, 0)),
                   pl.BlockSpec((1, T, Vp), lambda i, j: (i, j, 0))),
        compiler_params=_cparams(2),
    )(x, w1, b1, w2, b2)


def _crop_mlp_kernel(xyz_ref, feat_ref, w1x_ref, w1f_ref, b1_ref, w2_ref, b2_ref, o_ref,
                     *, nsample):
    """CloudCrop SharedMLP (two matmul+ReLU) + max-pool over nsample.
    Input channels split into aligned 128-wide features and 3-wide xyz."""
    gx = xyz_ref[0].astype(jnp.bfloat16)                                # (T*K, 3)
    gf = feat_ref[0]                                                    # (T*K, C) bf16
    h = (jnp.dot(gx, w1x_ref[...], preferred_element_type=jnp.float32)
         + jnp.dot(gf, w1f_ref[...], preferred_element_type=jnp.float32)
         + b1_ref[...])
    h = jnp.maximum(h, 0.0)
    h = jnp.dot(h.astype(jnp.bfloat16), w2_ref[...],
                preferred_element_type=jnp.float32) + b2_ref[...]
    h = jnp.maximum(h, 0.0)
    TM = h.shape[0] // nsample
    h = h.reshape(TM, nsample, h.shape[-1])
    o_ref[0] = jnp.max(h, axis=1).astype(o_ref.dtype)                   # pool over nsample


def crop_shared_mlp(gxyz, gfeat, w1x, w1f, b1, w2, b2, nsample, *, tile_m=128):
    B, MK, _ = gxyz.shape
    C = gfeat.shape[-1]
    M = MK // nsample
    Ch = w1f.shape[1]
    Co = w2.shape[1]
    TM = _row_tile(M, tile_m)
    return pl.pallas_call(
        functools.partial(_crop_mlp_kernel, nsample=nsample),
        out_shape=jax.ShapeDtypeStruct((B, M, Co), jnp.float32),
        grid=(B, M // TM),
        in_specs=[
            pl.BlockSpec((1, TM * nsample, 3), lambda i, j: (i, j, 0)),
            pl.BlockSpec((1, TM * nsample, C), lambda i, j: (i, j, 0)),
            pl.BlockSpec((3, Ch), lambda i, j: (0, 0)),
            pl.BlockSpec((C, Ch), lambda i, j: (0, 0)),
            pl.BlockSpec((1, Ch), lambda i, j: (0, 0)),
            pl.BlockSpec((Ch, Co), lambda i, j: (0, 0)),
            pl.BlockSpec((1, Co), lambda i, j: (0, 0)),
        ],
        out_specs=pl.BlockSpec((1, TM, Co), lambda i, j: (i, j, 0)),
        compiler_params=_cparams(2),
    )(gxyz, gfeat, w1x, w1f, b1, w2, b2)


def _swad_kernel(x_ref, w1_ref, b1_ref, w2_ref, b2_ref, o_ref):
    """SWADNet conv1(ReLU) + conv_swad fused; output lane-padded to 128."""
    x = x_ref[0].astype(jnp.bfloat16)
    h = jnp.dot(x, w1_ref[...], preferred_element_type=jnp.float32) + b1_ref[...]
    h = jnp.maximum(h, 0.0)
    y = jnp.dot(h.astype(jnp.bfloat16), w2_ref[...],
                preferred_element_type=jnp.float32) + b2_ref[...]
    o_ref[0] = y.astype(o_ref.dtype)


def swad_net(x, w1, b1, w2, b2, *, tile_m=512):
    B, M, Cin = x.shape
    Ch = w1.shape[1]
    Co = w2.shape[1]
    T = _row_tile(M, tile_m)
    return pl.pallas_call(
        _swad_kernel,
        out_shape=jax.ShapeDtypeStruct((B, M, Co), jnp.float32),
        grid=(B, M // T),
        in_specs=[
            pl.BlockSpec((1, T, Cin), lambda i, j: (i, j, 0)),
            pl.BlockSpec((Cin, Ch), lambda i, j: (0, 0)),
            pl.BlockSpec((1, Ch), lambda i, j: (0, 0)),
            pl.BlockSpec((Ch, Co), lambda i, j: (0, 0)),
            pl.BlockSpec((1, Co), lambda i, j: (0, 0)),
        ],
        out_specs=pl.BlockSpec((1, T, Co), lambda i, j: (i, j, 0)),
        compiler_params=_cparams(2),
    )(x, w1, b1, w2, b2)


# ======================= plain-JAX glue (data-dependent ops) ========================
def fps_masked(xyz, mask, m):
    """Furthest point sampling restricted to `mask` points.  xyz: (N,3) -> indices (m,)."""
    N = xyz.shape[0]
    big_neg = jnp.float32(-1e10)
    first = jnp.argmax(mask).astype(jnp.int32)
    dist0 = jnp.full((N,), 1e10, jnp.float32)
    idxs0 = jnp.zeros((m,), jnp.int32).at[0].set(first)

    def body(i, carry):
        dist, idxs, last = carry
        d = jnp.sum((xyz - xyz[last]) ** 2, axis=-1)
        dist = jnp.minimum(dist, d)
        score = jnp.where(mask, dist, big_neg)
        nxt = jnp.argmax(score).astype(jnp.int32)
        idxs = idxs.at[i].set(nxt)
        return dist, idxs, nxt

    _, idxs, _ = lax.fori_loop(1, m, body, (dist0, idxs0, first))
    return idxs


def generate_grasp_views(n):
    phi = (np.sqrt(5) - 1) / 2
    i = np.arange(n)
    z = (2 * i + 1) / n - 1
    x = np.sqrt(1 - z ** 2) * np.cos(2 * i * np.pi * phi)
    y = np.sqrt(1 - z ** 2) * np.sin(2 * i * np.pi * phi)
    return jnp.asarray(np.stack([x, y, z], axis=1), dtype=jnp.float32)


def batch_viewpoint_to_matrix(towards):
    """batch_viewpoint_params_to_matrix with in-plane angle = 0.  towards: (..., 3)."""
    axis_x = towards
    zeros = jnp.zeros_like(axis_x[..., 0])
    axis_y = jnp.stack([-axis_x[..., 1], axis_x[..., 0], zeros], axis=-1)
    y_norm = jnp.linalg.norm(axis_y, axis=-1, keepdims=True)
    axis_y = jnp.where(y_norm == 0, jnp.array([0.0, 1.0, 0.0], jnp.float32), axis_y)
    axis_x = axis_x / jnp.linalg.norm(axis_x, axis=-1, keepdims=True)
    axis_y = axis_y / jnp.linalg.norm(axis_y, axis=-1, keepdims=True)
    axis_z = jnp.cross(axis_x, axis_y)
    return jnp.stack([axis_x, axis_y, axis_z], axis=-1)  # columns = axes


def cylinder_group_indices(xyz, centers, rots, radius, hmin, hmax, nsample):
    """CylinderQueryAndGroup (use_xyz=True, normalize_xyz=True, rotate_xyz=True).
    Returns grouped normalized local xyz (M, nsample, 3) and neighbor indices (M, nsample)."""
    N = xyz.shape[0]

    def per_seed(c, R):
        d = xyz - c
        local = d @ R  # coords in the grasp frame (approach axis = x)
        r2 = local[:, 1] ** 2 + local[:, 2] ** 2
        valid = (local[:, 0] >= hmin) & (local[:, 0] <= hmax) & (r2 <= radius ** 2)
        order = jnp.argsort(jnp.where(valid, jnp.arange(N), N + jnp.arange(N)))
        num_valid = jnp.sum(valid)
        idx = order[:nsample]
        idx = jnp.where(jnp.arange(nsample) < num_valid, idx, order[0])
        idx = jnp.where(num_valid > 0, idx, 0)
        gxyz = local[idx] / radius
        return gxyz, idx

    return jax.vmap(per_seed)(centers, rots)


# ======================= model ======================================================
class GraspNetPallas:
    def __init__(self, cylinder_radius=0.05, seed_feat_dim=128, is_training=False,
                 num_points=512, m_points=64, num_heads=4, nsample=16,
                 hmin=-0.02, hmax=0.04, key=jax.random.PRNGKey(1)):
        self.seed_feature_dim = seed_feat_dim
        self.is_training = is_training
        self.num_points = num_points
        self.M_points = m_points
        self.num_view = NUM_VIEW
        self.num_angle = NUM_ANGLE
        self.num_depth = NUM_DEPTH
        self.num_heads = num_heads
        self.nsample = nsample
        self.cylinder_radius = cylinder_radius
        self.hmin = hmin
        self.hmax = hmax

        C = seed_feat_dim
        self.gr_pad = _round_up(3, 128)                         # 128
        self.view_pad = _round_up(NUM_VIEW, 128)                # 384
        self.swad_out = 2 * NUM_ANGLE * NUM_DEPTH               # 96
        self.swad_pad = _round_up(self.swad_out, 128)           # 128

        keys = jax.random.split(key, 12)

        def lin(k, cin, cout):
            w = jax.random.normal(k, (cin, cout), jnp.float32) / np.sqrt(cin)
            return w, jnp.zeros((cout,), jnp.float32)

        def pad_cols(w, b, cpad):
            c = w.shape[1]
            if cpad > c:
                w = jnp.pad(w, ((0, 0), (0, cpad - c)))
                b = jnp.pad(b, (0, cpad - c))
            return w, b

        p = {}

        def store(name, w, b):
            p[name + "_w"] = w.astype(jnp.bfloat16)
            p[name + "_b"] = b.reshape(1, -1).astype(jnp.float32)

        # TODO(synk): MinkUNet14D sparse 3D conv backbone + ME quantize2original gather have no
        # dense Pallas equivalent; replaced by a pointwise linear lift (3 -> C) stand-in.
        bw, bb = lin(keys[0], 3, C)
        store("bk", bw, bb)
        # GraspableNet: Conv1d(C, 3, 1), output padded to 128 lanes
        # (bias nudged positive so the synthetic run has graspable points).
        gw, _ = lin(keys[1], C, 3)
        gb = jnp.array([0.0, 0.5, 0.5], jnp.float32)
        store("gr", *pad_cols(gw, gb, self.gr_pad))
        # ApproachNet: conv1 (C->C, relu), conv2 (C->num_view padded to 384)
        store("ap1", *lin(keys[2], C, C))
        store("ap2", *pad_cols(*lin(keys[3], C, NUM_VIEW), self.view_pad))
        # RelationNet: fused QKV projection + out projection
        wq, bq = lin(keys[4], C, C)
        wk, bk = lin(keys[5], C, C)
        wv, bv = lin(keys[6], C, C)
        wo, bo = lin(keys[7], C, C)
        store("rel_qkv", jnp.concatenate([wq, wk, wv], axis=1),
              jnp.concatenate([bq, bk, bv]))
        store("rel_o", wo, bo)
        # CloudCrop SharedMLP [3+C, 256, 256] (BN eval-mode default stats == identity);
        # first-layer weight split into xyz (3) and aligned feature (C) parts.
        cr1_w, cr1_b = lin(keys[8], 3 + C, 256)
        store("cr1x", cr1_w[:3], cr1_b)          # bias stored once (cr1x_b used)
        p["cr1f_w"] = cr1_w[3:].astype(jnp.bfloat16)
        store("cr2", *lin(keys[9], 256, 256))
        # SWADNet: conv1 (256->256, relu), conv_swad (256 -> 96 padded to 128)
        store("sw1", *lin(keys[10], 256, 256))
        store("sw2", *pad_cols(*lin(keys[11], 256, self.swad_out), self.swad_pad))

        self.params = p
        self.template_views = generate_grasp_views(NUM_VIEW)
        # TODO(synk): WarpNet / teacher branch (end_points_T) and process_grasp_labels /
        # match_grasp_view_and_label (training-time label machinery) are not implemented.

    def __call__(self, end_points):
        p = self.params
        C = self.seed_feature_dim
        seed_xyz = end_points["point_clouds"][:, : self.num_points]      # (B, N, 3)
        feats_in = end_points["feats"][:, : self.num_points]             # (B, N, 3)
        B, N, _ = seed_xyz.shape

        # --- backbone stand-in fused with GraspableNet (single Pallas kernel) ---
        seed_features, graspable_pad = backbone_graspable(
            feats_in, p["bk_w"], p["bk_b"], p["gr_w"], p["gr_b"])        # (B,N,C), (B,N,128)
        end_points["SEEDXYZ"] = seed_xyz
        end_points["FEATS"] = seed_features

        objectness_score = graspable_pad[..., :2]                        # (B, N, 2)
        graspness_score = graspable_pad[..., 2]                          # (B, N)
        end_points["objectness_score"] = objectness_score
        end_points["graspness_score"] = graspness_score
        objectness_mask = jnp.argmax(objectness_score, axis=-1) == 1
        graspness_mask = graspness_score > GRASPNESS_THRESHOLD
        graspable_mask = objectness_mask & graspness_mask
        end_points["graspable_mask"] = graspable_mask
        graspable_num_batch = jnp.sum(graspable_mask).astype(jnp.float32)

        # --- masked FPS + gather (plain-JAX glue; assumes every batch has >=1 graspable pt) ---
        fps_idx = jax.vmap(lambda x, m: fps_masked(x, m, self.M_points))(seed_xyz, graspable_mask)
        seed_xyz_graspable = jnp.take_along_axis(seed_xyz, fps_idx[..., None], axis=1)        # (B,M,3)
        seed_feat_graspable = jnp.take_along_axis(seed_features, fps_idx[..., None], axis=1)  # (B,M,C)
        seed_xyz_fps = seed_xyz_graspable

        # --- RelationNet (Pallas: fused QKV projection + query-tiled MHA) ---
        seed_feat_graspable, sr_map = relation_attention(seed_feat_graspable, p, self.num_heads)
        end_points["sr_map"] = sr_map
        end_points["xyz_graspable"] = seed_xyz_graspable
        end_points["graspable_count_stage1"] = graspable_num_batch / B
        end_points["seed_features_graspable"] = seed_feat_graspable      # (B, M, C)

        # --- ApproachNet (fused conv1+conv2+residual, inference branch) ---
        seed_feat_plus, view_score_pad = approach_net(
            seed_feat_graspable, p["ap1_w"], p["ap1_b"], p["ap2_w"], p["ap2_b"])
        view_score = view_score_pad[..., : NUM_VIEW]                     # (B, M, 300)
        end_points["view_score"] = view_score
        top_view_inds = jnp.argmax(view_score, axis=-1)
        vp_xyz = self.template_views[top_view_inds]                      # (B, M, 3)
        vp_rot = batch_viewpoint_to_matrix(-vp_xyz)                      # (B, M, 3, 3)
        end_points["grasp_top_view_inds"] = top_view_inds
        end_points["grasp_top_view_xyz"] = vp_xyz
        end_points["grasp_top_view_rot"] = vp_rot

        # --- CloudCrop: cylinder query/group (glue) + SharedMLP + maxpool (Pallas) ---
        # TODO(synk): the neighbor gather could move in-kernel via PrefetchScalarGridSpec to
        # avoid materializing grouped features in HBM; kept in XLA for robustness.
        gxyz, gidx = jax.vmap(
            lambda xyz_b, c_b, r_b: cylinder_group_indices(
                xyz_b, c_b, r_b, self.cylinder_radius, self.hmin, self.hmax, self.nsample)
        )(seed_xyz_fps, seed_xyz_graspable, vp_rot)                      # (B,M,K,3), (B,M,K)
        grouped_feats = jax.vmap(lambda f, i: f[i])(seed_feat_plus, gidx)  # (B, M, K, C)
        M, K = self.M_points, self.nsample
        group_features = crop_shared_mlp(
            gxyz.reshape(B, M * K, 3),
            grouped_feats.reshape(B, M * K, C).astype(jnp.bfloat16),
            p["cr1x_w"], p["cr1f_w"], p["cr1x_b"], p["cr2_w"], p["cr2_b"], K)   # (B, M, 256)

        # --- SWADNet (fused, lane-dense padded output; single wrapper reshape) ---
        y_pad = swad_net(group_features, p["sw1_w"], p["sw1_b"], p["sw2_w"], p["sw2_b"])
        y = y_pad[..., : self.swad_out].reshape(B, M, 2, self.num_angle, self.num_depth)
        end_points["grasp_score_pred"] = y[:, :, 0]                      # (B, M, A, D)
        end_points["grasp_width_pred"] = y[:, :, 1]                      # (B, M, A, D)
        return end_points


# ======================= main =======================================================
if __name__ == "__main__":
    key = jax.random.PRNGKey(0)
    k_xyz, k_feat = jax.random.split(key)
    B, N = 2, 512
    point_clouds = jax.random.uniform(k_xyz, (B, N, 3), jnp.float32) * 0.1   # metres-ish scale
    feats = jax.random.normal(k_feat, (B, N, 3), jnp.float32)                # per-point features

    model = GraspNetPallas(cylinder_radius=0.05, seed_feat_dim=128, is_training=False,
                           num_points=N, m_points=64)
    end_points = model({"point_clouds": point_clouds, "feats": feats})

    jax.block_until_ready(end_points["grasp_score_pred"])
    jax.block_until_ready(end_points["grasp_width_pred"])
    jax.block_until_ready(end_points["sr_map"])

    assert end_points["grasp_score_pred"].shape == (B, 64, NUM_ANGLE, NUM_DEPTH)
    assert end_points["grasp_width_pred"].shape == (B, 64, NUM_ANGLE, NUM_DEPTH)
    assert end_points["sr_map"].shape == (B, 64, 64)
    assert end_points["xyz_graspable"].shape == (B, 64, 3)
    assert end_points["view_score"].shape == (B, 64, NUM_VIEW)
    assert bool(jnp.all(jnp.isfinite(end_points["grasp_score_pred"])))
    print("KERNEL_OK")
</pallas_src>

<mosaic_0001>
module attributes {stable_mosaic.version = 11 : i64} {
  func.func @_backbone_graspable_kernel(%arg0: i32, %arg1: i32, %arg2: memref<1x512x3xf32, #tpu.memory_space<vmem>>, %arg3: memref<3x128xbf16, #tpu.memory_space<vmem>>, %arg4: memref<1x128xf32, #tpu.memory_space<vmem>>, %arg5: memref<128x128xbf16, #tpu.memory_space<vmem>>, %arg6: memref<1x128xf32, #tpu.memory_space<vmem>>, %arg7: memref<1x512x128xf32, #tpu.memory_space<vmem>>, %arg8: memref<1x512x128xf32, #tpu.memory_space<vmem>>) attributes {dimension_semantics = [#tpu.dimension_semantics<parallel>, #tpu.dimension_semantics<parallel>], iteration_bounds = array<i64: 2, 1>, scalar_prefetch = 0 : i64, scratch_operands = 0 : i64, tpu.core_type = #tpu.core_type<tc>, window_params = [{transform_indices = @transform_0, window_bounds = array<i64: 1, 512, 3>}, {pipeline_mode = #tpu.pipeline_mode<synchronous>, transform_indices = @transform_1, window_bounds = array<i64: 3, 128>}, {pipeline_mode = #tpu.pipeline_mode<synchronous>, transform_indices = @transform_2, window_bounds = array<i64: 1, 128>}, {pipeline_mode = #tpu.pipeline_mode<synchronous>, transform_indices = @transform_3, window_bounds = array<i64: 128, 128>}, {pipeline_mode = #tpu.pipeline_mode<synchronous>, transform_indices = @transform_4, window_bounds = array<i64: 1, 128>}, {transform_indices = @transform_5, window_bounds = array<i64: 1, 512, 128>}, {transform_indices = @transform_6, window_bounds = array<i64: 1, 512, 128>}]} {
    %c0 = arith.constant 0 : index
    %c0_0 = arith.constant 0 : index
    %c0_1 = arith.constant 0 : index
    %0 = vector.load %arg2[%c0, %c0_0, %c0_1] : memref<1x512x3xf32, #tpu.memory_space<vmem>>, vector<1x512x3xf32>
    %1 = vector.shape_cast %0 : vector<1x512x3xf32> to vector<512x3xf32>
    %2 = arith.truncf %1 : vector<512x3xf32> to vector<512x3xbf16>
    %c0_2 = arith.constant 0 : index
    %c0_3 = arith.constant 0 : index
    %3 = vector.load %arg3[%c0_2, %c0_3] : memref<3x128xbf16, #tpu.memory_space<vmem>>, vector<3x128xbf16>
    %cst = arith.constant dense<0.000000e+00> : vector<512x128xf32>
    %4 = tpu.matmul %2, %3, %cst {dimension_numbers = #tpu.dot_dimension_numbers<[1], [0], [0], [1], [0, 0, 1, 1], [], []>} : vector<512x3xbf16>, vector<3x128xbf16>, vector<512x128xf32> -> vector<512x128xf32>
    %c0_4 = arith.constant 0 : index
    %c0_5 = arith.constant 0 : index
    %5 = vector.load %arg4[%c0_4, %c0_5] : memref<1x128xf32, #tpu.memory_space<vmem>>, vector<1x128xf32>
    %6 = vector.broadcast %5 : vector<1x128xf32> to vector<512x128xf32>
    %7 = arith.addf %4, %6 : vector<512x128xf32>
    %cst_6 = arith.constant 0.000000e+00 : f32
    %8 = vector.broadcast %cst_6 : f32 to vector<512x128xf32>
    %9 = arith.maximumf %7, %8 : vector<512x128xf32>
    %10 = arith.truncf %9 : vector<512x128xf32> to vector<512x128xbf16>
    %c0_7 = arith.constant 0 : index
    %c0_8 = arith.constant 0 : index
    %11 = vector.load %arg5[%c0_7, %c0_8] : memref<128x128xbf16, #tpu.memory_space<vmem>>, vector<128x128xbf16>
    %cst_9 = arith.constant dense<0.000000e+00> : vector<512x128xf32>
    %12 = tpu.matmul %10, %11, %cst_9 {dimension_numbers = #tpu.dot_dimension_numbers<[1], [0], [0], [1], [0, 0, 1, 1], [], []>} : vector<512x128xbf16>, vector<128x128xbf16>, vector<512x128xf32> -> vector<512x128xf32>
    %c0_10 = arith.constant 0 : index
    %c0_11 = arith.constant 0 : index
    %13 = vector.load %arg6[%c0_10, %c0_11] : memref<1x128xf32, #tpu.memory_space<vmem>>, vector<1x128xf32>
    %14 = vector.broadcast %13 : vector<1x128xf32> to vector<512x128xf32>
    %15 = arith.addf %12, %14 : vector<512x128xf32>
    %c0_12 = arith.constant 0 : index
    %c0_13 = arith.constant 0 : index
    %c0_14 = arith.constant 0 : index
    %16 = vector.load %arg7[%c0_12, %c0_13, %c0_14] : memref<1x512x128xf32, #tpu.memory_space<vmem>>, vector<1x512x128xf32>
    %17 = vector.shape_cast %16 : vector<1x512x128xf32> to vector<512x128xf32>
    %18 = vector.shape_cast %9 : vector<512x128xf32> to vector<1x512x128xf32>
    tpu.vector_store %arg7[%c0_12, %c0_13, %c0_14], %18 {strides = array<i32>} : memref<1x512x128xf32, #tpu.memory_space<vmem>>, vector<1x512x128xf32>,
    %c0_15 = arith.constant 0 : index
    %c0_16 = arith.constant 0 : index
    %c0_17 = arith.constant 0 : index
    %19 = vector.load %arg8[%c0_15, %c0_16, %c0_17] : memref<1x512x128xf32, #tpu.memory_space<vmem>>, vector<1x512x128xf32>
    %20 = vector.shape_cast %19 : vector<1x512x128xf32> to vector<512x128xf32>
    %21 = vector.shape_cast %15 : vector<512x128xf32> to vector<1x512x128xf32>
    tpu.vector_store %arg8[%c0_15, %c0_16, %c0_17], %21 {strides = array<i32>} : memref<1x512x128xf32, #tpu.memory_space<vmem>>, vector<1x512x128xf32>,
    return
  }
  func.func @transform_0(%arg0: i32, %arg1: i32) -> (i32, i32, i32) {
    %c0_i32 = arith.constant 0 : i32
    %c0_i32_0 = arith.constant 0 : i32
    return %arg0, %arg1, %c0_i32 : i32, i32, i32
  }
  func.func @transform_1(%arg0: i32, %arg1: i32) -> (i32, i32) {
    %c0_i32 = arith.constant 0 : i32
    %c0_i32_0 = arith.constant 0 : i32
    %c0_i32_1 = arith.constant 0 : i32
    return %c0_i32, %c0_i32_0 : i32, i32
  }
  func.func @transform_2(%arg0: i32, %arg1: i32) -> (i32, i32) {
    %c0_i32 = arith.constant 0 : i32
    %c0_i32_0 = arith.constant 0 : i32
    %c0_i32_1 = arith.constant 0 : i32
    return %c0_i32, %c0_i32_0 : i32, i32
  }
  func.func @transform_3(%arg0: i32, %arg1: i32) -> (i32, i32) {
    %c0_i32 = arith.constant 0 : i32
    %c0_i32_0 = arith.constant 0 : i32
    %c0_i32_1 = arith.constant 0 : i32
    return %c0_i32, %c0_i32_0 : i32, i32
  }
  func.func @transform_4(%arg0: i32, %arg1: i32) -> (i32, i32) {
    %c0_i32 = arith.constant 0 : i32
    %c0_i32_0 = arith.constant 0 : i32
    %c0_i32_1 = arith.constant 0 : i32
    return %c0_i32, %c0_i32_0 : i32, i32
  }
  func.func @transform_5(%arg0: i32, %arg1: i32) -> (i32, i32, i32) {
    %c0_i32 = arith.constant 0 : i32
    %c0_i32_0 = arith.constant 0 : i32
    return %arg0, %arg1, %c0_i32 : i32, i32, i32
  }
  func.func @transform_6(%arg0: i32, %arg1: i32) -> (i32, i32, i32) {
    %c0_i32 = arith.constant 0 : i32
    %c0_i32_0 = arith.constant 0 : i32
    return %arg0, %arg1, %c0_i32 : i32, i32, i32
  }
}

</mosaic_0001>

<llo_original>
// kernel: tpu_custom_call.1
$region0: #{tpu_custom_call.1}
  #allocation0 [shape = 'u32[]', space=smem, size = 0x4, offset = 0x4, fixed_abs, tag = 'smem constant byte address 0x4 - core index']
  #allocation1 [shape = 'u32[72,128]{1,0:T(1,128)}', space=vmem, size = 0x9000, scoped, tag = 'internal scratch']
  %s0 = inlined_call_operand.vmem [shape: f32[2,512,3], index: 0, kind: input, shape index: {}]
  %s1 = inlined_call_operand.vmem [shape: bf16[3,128], index: 1, kind: input, shape index: {}]
  %s2 = inlined_call_operand.vmem [shape: f32[1,128], index: 2, kind: input, shape index: {}]
  %s3 = inlined_call_operand.vmem [shape: bf16[128,128], index: 3, kind: input, shape index: {}]
  %s4 = inlined_call_operand.vmem [shape: f32[1,128], index: 4, kind: input, shape index: {}]
  %s5 = inlined_call_operand.hbm [shape: f32[2,512,128], index: 5, kind: output, shape index: {0}]
  %s6 = inlined_call_operand.hbm [shape: f32[2,512,128], index: 6, kind: output, shape index: {1}]
  %7 = xla_tuple %s5, %s6
  %s8 = sld [smem:[#allocation0]]
  $region61: #{tpu_custom_call.1} parent=0
    _
  %s10 = ssub.s32 1, %s8
  %s11 = scalar_select 0, %s10, %s8
  $region1: #{tpu_custom_call.1} parent=0
    #allocation2 [shape = 'u8[524288]{0}', space=vmem, size = 0x80000, scoped, tag = 'output window, operand 0']
    #allocation3 [shape = 's32[2]{0}', space=sflag, size = 0x8, scoped, tag = 'scoped memory for tpu_custom_call.1']
    #allocation4 [shape = 'u8[524288]{0}', space=vmem, size = 0x80000, scoped, tag = 'output window, operand 1']
    #allocation5 [shape = 's32[2]{0}', space=sflag, size = 0x8, scoped, tag = 'scoped memory for tpu_custom_call.1']
    %12 = vsyncpa [#allocation3], 0
    %s13 = scalar_lea.sflag [#allocation3], 1
    %14 = vsyncpa %s13, 0
    %15 = vsyncpa [#allocation5], 0
    %s16 = scalar_lea.sflag [#allocation5], 1
    %17 = vsyncpa %s16, 0
    loop: start=0, step=1, limit=4
    $region2: #{tpu_custom_call.1} parent=1 // loop_pre_header
      _
    $region3: #{tpu_custom_call.1} parent=1 // loop_header
      %s19 = sphi 0, %s23
      %p20 = scmp.ge.s32.totalorder %s19, 4
      %s26 = sphi 0, %s38
      %s27 = sphi 0, %s34
      %s28 = sphi 0, %s26
      %s29 = sphi 0, %s27
      %s30 = sphi 0, %s28
      %s31 = sphi 0, %s29
      %s43 = sphi 0, %s45
      %s46 = sphi 0, %s43
      %s47 = sphi 0, %s46
      %s63 = sphi 0, %s47
      %s67 = sphi 0, %s67
      %s69 = sphi 0, %s67
      %s70 = sphi 0, %s69
      %s84 = sphi 0, %s70
      %s88 = sphi 0, %s88
      %s90 = sphi 0, %s88
      %s91 = sphi 0, %s90
      %s105 = sphi 0, %s91
      %s109 = sphi 0, %s109
      %s111 = sphi 0, %s109
      %s112 = sphi 0, %s111
      %s126 = sphi 0, %s112
      %s130 = sphi 0, %s130
      %s132 = sphi 0, %s130
      %s133 = sphi 0, %s132
      %s147 = sphi 0, %s133
      %s155 = sphi 0, %s157
      %s158 = sphi 0, %s155
      %s159 = sphi 0, %s158
      %s175 = sphi 0, %s159
      %s183 = sphi 0, %s185
      %s186 = sphi 0, %s183
      %s187 = sphi 0, %s186
      %s203 = sphi 0, %s187
    $region4: #{tpu_custom_call.1} parent=1 // loop_header_branch
      %22 = sbr.rel (%p20) target = $region8
    $region5: #{tpu_custom_call.1} parent=1 // loop_body
      %s24 = ssub.s32 %s19, 1
      %s25 = ssub.s32 %s19, 2
      %s32 = sadd.s32 1, %s27
      %p33 = scmp.ge.s32.totalorder %s32, 1
      %s34 = scalar_select %p33, 0, %s32
      %s35 = sadd.s32 1, %s26
      %s36 = scalar_select %p33, %s35, %s26
      %p37 = scmp.ge.s32.totalorder %s36, 2
      %s38 = scalar_select %p37, 0, %s36
      %s39 = ssub.s32 %s26, %s38
      %s40 = ssub.s32 %s27, %s34
      %s41 = sor.u32 %s39, %s40
      %p42 = scmp.eq.s32.totalorder %s41, 0
      %s44 = sadd.s32 %s43, 1
      %s45 = scalar_select %p42, %s43, %s44
      %p48 = pneg %p42
      %p49 = scmp.eq.s32.totalorder %s19, 1
      %p50 = por %p48, %p49
      %p51 = scmp.ne.s32.totalorder %s43, %s46
      %p52 = scmp.eq.s32.totalorder %s19, 0
      %p53 = por %p51, %p52
      %p54 = scmp.ne.s32.totalorder %s43, %s46
      %p55 = scmp.eq.s32.totalorder %s24, 1
      %p56 = por %p54, %p55
      %p57 = scmp.ne.s32.totalorder %s46, %s47
      %p58 = scmp.eq.s32.totalorder %s24, 0
      %p59 = por %p57, %p58
      %p60 = scmp.ne.s32.totalorder %s46, %s47
      %p61 = scmp.eq.s32.totalorder %s25, 1
      %p62 = por %p60, %p61
      %p64 = scmp.ne.s32.totalorder %s47, %s63
      %p65 = scmp.eq.s32.totalorder %s25, 0
      %p66 = por %p64, %p65
      %s68 = sadd.s32 %s67, 1
      %p71 = scmp.eq.s32.totalorder %s19, 1
      %p72 = scmp.ne.s32.totalorder %s67, %s69
      %p73 = scmp.eq.s32.totalorder %s19, 0
      %p74 = por %p72, %p73
      %p75 = scmp.ne.s32.totalorder %s67, %s69
      %p76 = scmp.eq.s32.totalorder %s24, 1
      %p77 = por %p75, %p76
      %p78 = scmp.ne.s32.totalorder %s69, %s70
      %p79 = scmp.eq.s32.totalorder %s24, 0
      %p80 = por %p78, %p79
      %p81 = scmp.ne.s32.totalorder %s69, %s70
      %p82 = scmp.eq.s32.totalorder %s25, 1
      %p83 = por %p81, %p82
      %p85 = scmp.ne.s32.totalorder %s70, %s84
      %p86 = scmp.eq.s32.totalorder %s25, 0
      %p87 = por %p85, %p86
      %s89 = sadd.s32 %s88, 1
      %p92 = scmp.eq.s32.totalorder %s19, 1
      %p93 = scmp.ne.s32.totalorder %s88, %s90
      %p94 = scmp.eq.s32.totalorder %s19, 0
      %p95 = por %p93, %p94
      %p96 = scmp.ne.s32.totalorder %s88, %s90
      %p97 = scmp.eq.s32.totalorder %s24, 1
      %p98 = por %p96, %p97
      %p99 = scmp.ne.s32.totalorder %s90, %s91
      %p100 = scmp.eq.s32.totalorder %s24, 0
      %p101 = por %p99, %p100
      %p102 = scmp.ne.s32.totalorder %s90, %s91
      %p103 = scmp.eq.s32.totalorder %s25, 1
      %p104 = por %p102, %p103
      %p106 = scmp.ne.s32.totalorder %s91, %s105
      %p107 = scmp.eq.s32.totalorder %s25, 0
      %p108 = por %p106, %p107
      %s110 = sadd.s32 %s109, 1
      %p113 = scmp.eq.s32.totalorder %s19, 1
      %p114 = scmp.ne.s32.totalorder %s109, %s111
      %p115 = scmp.eq.s32.totalorder %s19, 0
      %p116 = por %p114, %p115
      %p117 = scmp.ne.s32.totalorder %s109, %s111
      %p118 = scmp.eq.s32.totalorder %s24, 1
      %p119 = por %p117, %p118
      %p120 = scmp.ne.s32.totalorder %s111, %s112
      %p121 = scmp.eq.s32.totalorder %s24, 0
      %p122 = por %p120, %p121
      %p123 = scmp.ne.s32.totalorder %s111, %s112
      %p124 = scmp.eq.s32.totalorder %s25, 1
      %p125 = por %p123, %p124
      %p127 = scmp.ne.s32.totalorder %s112, %s126
      %p128 = scmp.eq.s32.totalorder %s25, 0
      %p129 = por %p127, %p128
      %s131 = sadd.s32 %s130, 1
      %p134 = scmp.eq.s32.totalorder %s19, 1
      %p135 = scmp.ne.s32.totalorder %s130, %s132
      %p136 = scmp.eq.s32.totalorder %s19, 0
      %p137 = por %p135, %p136
      %p138 = scmp.ne.s32.totalorder %s130, %s132
      %p139 = scmp.eq.s32.totalorder %s24, 1
      %p140 = por %p138, %p139
      %p141 = scmp.ne.s32.totalorder %s132, %s133
      %p142 = scmp.eq.s32.totalorder %s24, 0
      %p143 = por %p141, %p142
      %p144 = scmp.ne.s32.totalorder %s132, %s133
      %p145 = scmp.eq.s32.totalorder %s25, 1
      %p146 = por %p144, %p145
      %p148 = scmp.ne.s32.totalorder %s133, %s147
      %p149 = scmp.eq.s32.totalorder %s25, 0
      %p150 = por %p148, %p149
      %s151 = ssub.s32 %s26, %s38
      %s152 = ssub.s32 %s27, %s34
      %s153 = sor.u32 %s151, %s152
      %p154 = scmp.eq.s32.totalorder %s153, 0
      %s156 = sadd.s32 %s155, 1
      %s157 = scalar_select %p154, %s155, %s156
      %p160 = pneg %p154
      %p161 = scmp.eq.s32.totalorder %s19, 1
      %p162 = por %p160, %p161
      %p163 = scmp.ne.s32.totalorder %s155, %s158
      %p164 = scmp.eq.s32.totalorder %s19, 0
      %p165 = por %p163, %p164
      %p166 = scmp.ne.s32.totalorder %s155, %s158
      %p167 = scmp.eq.s32.totalorder %s24, 1
      %p168 = por %p166, %p167
      %p169 = scmp.ne.s32.totalorder %s158, %s159
      %p170 = scmp.eq.s32.totalorder %s24, 0
      %p171 = por %p169, %p170
      %p172 = scmp.ne.s32.totalorder %s158, %s159
      %p173 = scmp.eq.s32.totalorder %s25, 1
      %p174 = por %p172, %p173
      %p176 = scmp.ne.s32.totalorder %s159, %s175
      %p177 = scmp.eq.s32.totalorder %s25, 0
      %p178 = por %p176, %p177
      %s179 = ssub.s32 %s26, %s38
      %s180 = ssub.s32 %s27, %s34
      %s181 = sor.u32 %s179, %s180
      %p182 = scmp.eq.s32.totalorder %s181, 0
      %s184 = sadd.s32 %s183, 1
      %s185 = scalar_select %p182, %s183, %s184
      %p188 = pneg %p182
      %p189 = scmp.eq.s32.totalorder %s19, 1
      %p190 = por %p188, %p189
      %p191 = scmp.ne.s32.totalorder %s183, %s186
      %p192 = scmp.eq.s32.totalorder %s19, 0
      %p193 = por %p191, %p192
      %p194 = scmp.ne.s32.totalorder %s183, %s186
      %p195 = scmp.eq.s32.totalorder %s24, 1
      %p196 = por %p194, %p195
      %p197 = scmp.ne.s32.totalorder %s186, %s187
      %p198 = scmp.eq.s32.totalorder %s24, 0
      %p199 = por %p197, %p198
      %p200 = scmp.ne.s32.totalorder %s186, %s187
      %p201 = scmp.eq.s32.totalorder %s25, 1
      %p202 = por %p200, %p201
      %p204 = scmp.ne.s32.totalorder %s187, %s203
      %p205 = scmp.eq.s32.totalorder %s25, 0
      %p206 = por %p204, %p205
      %p207 = scmp.le.s32.totalorder 1, %s19
      %p208 = scmp.lt.s32.totalorder %s19, 3
      %p209 = pnand %p207, %p208
      %p210 = pneg %p209
      // Predicated region
      $region9: #{tpu_custom_call.1} parent=5 // pred_check
        _
      $region10: #{tpu_custom_call.1} parent=5 // pred_check_branch
        %212 = sbr.rel (%p209) target = $region12
      $region11: #{tpu_custom_call.1} parent=5 // pred_region
        %s213 = ssub.s32 %s19, 1
        // Predicated region
        $region13: #{tpu_custom_call.1} parent=11 // pred_check
          %p214 = pneg %p80
        $region14: #{tpu_custom_call.1} parent=11 // pred_check_branch
          %216 = sbr.rel (%p214) target = $region16
        $region15: #{tpu_custom_call.1} parent=11 // pred_region
          _
        $region16: #{tpu_custom_call.1} parent=11 // pred_fallthru
          _
        // Predicated region
        $region17: #{tpu_custom_call.1} parent=11 // pred_check
          %p217 = pneg %p101
        $region18: #{tpu_custom_call.1} parent=11 // pred_check_branch
          %219 = sbr.rel (%p217) target = $region20
        $region19: #{tpu_custom_call.1} parent=11 // pred_region
          _
        $region20: #{tpu_custom_call.1} parent=11 // pred_fallthru
          _
        // Predicated region
        $region21: #{tpu_custom_call.1} parent=11 // pred_check
          %p220 = pneg %p122
        $region22: #{tpu_custom_call.1} parent=11 // pred_check_branch
          %222 = sbr.rel (%p220) target = $region24
        $region23: #{tpu_custom_call.1} parent=11 // pred_region
          _
        $region24: #{tpu_custom_call.1} parent=11 // pred_fallthru
          _
        // Predicated region
        $region25: #{tpu_custom_call.1} parent=11 // pred_check
          %p223 = pneg %p143
        $region26: #{tpu_custom_call.1} parent=11 // pred_check_branch
          %225 = sbr.rel (%p223) target = $region28
        $region27: #{tpu_custom_call.1} parent=11 // pred_region
          _
        $region28: #{tpu_custom_call.1} parent=11 // pred_fallthru
          _
      $region12: #{tpu_custom_call.1} parent=5 // pred_fallthru
        _
      %p226 = scmp.lt.s32.totalorder %s19, 2
      // Predicated region
      $region29: #{tpu_custom_call.1} parent=5 // pred_check
        %p227 = pneg %p226
      $region30: #{tpu_custom_call.1} parent=5 // pred_check_branch
        %229 = sbr.rel (%p227) target = $region32
      $region31: #{tpu_custom_call.1} parent=5 // pred_region
        // Predicated region
        $region33: #{tpu_custom_call.1} parent=31 // pred_check
          %p230 = pneg %p53
        $region34: #{tpu_custom_call.1} parent=31 // pred_check_branch
          %232 = sbr.rel (%p230) target = $region36
        $region35: #{tpu_custom_call.1} parent=31 // pred_region
          %s233 = smul.u32 64, %s27
          %p234 = scmp.lt.s32.totalorder %s26, 1
          %s235 = scalar_select %p234, %s26, 1
          %p236 = scmp.lt.s32.totalorder %s233, 63
          %s237 = scalar_select %p236, %s233, 63
          %s238 = smul.addr %s235, 64
          %s239 = sadd.s32 %s237, %s238
          %s240 = smul.addr %s239, 8
          %s241 = scalar_lea.vmem %s0, %s240
          %s242 = smul.u32 64, %s27
        $region36: #{tpu_custom_call.1} parent=31 // pred_fallthru
          _
      $region32: #{tpu_custom_call.1} parent=5 // pred_fallthru
        _
      %p243 = scmp.le.s32.totalorder 1, %s19
      %p244 = scmp.lt.s32.totalorder %s19, 3
      %p245 = pnand %p243, %p244
      %p246 = pneg %p245
      // Predicated region
      $region37: #{tpu_custom_call.1} parent=5 // pred_check
        _
      $region38: #{tpu_custom_call.1} parent=5 // pred_check_branch
        %248 = sbr.rel (%p245) target = $region40
      $region39: #{tpu_custom_call.1} parent=5 // pred_region
        %s249 = ssub.s32 %s19, 1
        %s250 = smul.u32 64, %s29
        %p251 = scmp.lt.s32.totalorder %s28, 1
        %s252 = scalar_select %p251, %s28, 1
        %p253 = scmp.lt.s32.totalorder %s250, 63
        %s254 = scalar_select %p253, %s250, 63
        %s255 = smul.addr %s252, 64
        %s256 = sadd.s32 %s254, %s255
        %s257 = smul.addr %s256, 8
        %s258 = scalar_lea.vmem %s0, %s257
        %p259 = pneg %p59
        %p260 = pneg %p56
        %p261 = pneg %p80
        %p262 = pneg %p77
        %p263 = pneg %p101
        %p264 = pneg %p98
        %p265 = pneg %p122
        %p266 = pneg %p119
        %p267 = pneg %p143
        %p268 = pneg %p140
        %p269 = pneg %p171
        %p270 = pneg %p168
        %s271 = sand.u32 %s158, 1
        %s272 = scalar_lea.sflag [#allocation3], %s271
        %s273 = sand.u32 %s158, 1
        %s274 = smul.addr %s273, 512
        %s275 = scalar_lea.vmem [#allocation2], %s274
        %p276 = pneg %p199
        %p277 = pneg %p196
        %s278 = sand.u32 %s186, 1
        %s279 = scalar_lea.sflag [#allocation5], %s278
        %s280 = sand.u32 %s186, 1
        %s281 = smul.addr %s280, 512
        %s282 = scalar_lea.vmem [#allocation4], %s281
        %s283 = smul.u32 64, %s29
        %p284 = scmp.lt.s32.totalorder %s28, 1
        %s285 = scalar_select %p284, %s28, 1
        %p286 = scmp.lt.s32.totalorder %s283, 63
        %s287 = scalar_select %p286, %s283, 63
        %s288 = smul.addr %s285, 64
        %s289 = sadd.s32 %s287, %s288
        %s290 = smul.addr %s289, 8
        %s291 = scalar_lea.vmem %s0, %s290
        %s292 = smul.u32 64, %s29
        %s293 = smul.u32 64, %s29
        %s294 = smul.u32 64, %s29
        %v296 = vld [vmem:[%s291] sm:$0xff]
        %v297 = vld [vmem:[%s291 + $0x8] sm:$0xff]
        %v298 = vld [vmem:[%s291 + $0x10] sm:$0xff]
        %v299 = vld [vmem:[%s291 + $0x18] sm:$0xff]
        %v300 = vld [vmem:[%s291 + $0x20] sm:$0xff]
        %v301 = vld [vmem:[%s291 + $0x28] sm:$0xff]
        %v302 = vld [vmem:[%s291 + $0x30] sm:$0xff]
        %v303 = vld [vmem:[%s291 + $0x38] sm:$0xff]
        %v304 = vld [vmem:[%s291 + $0x40] sm:$0xff]
        %v305 = vld [vmem:[%s291 + $0x48] sm:$0xff]
        %v306 = vld [vmem:[%s291 + $0x50] sm:$0xff]
        %v307 = vld [vmem:[%s291 + $0x58] sm:$0xff]
        %v308 = vld [vmem:[%s291 + $0x60] sm:$0xff]
        %v309 = vld [vmem:[%s291 + $0x68] sm:$0xff]
        %v310 = vld [vmem:[%s291 + $0x70] sm:$0xff]
        %v311 = vld [vmem:[%s291 + $0x78] sm:$0xff]
        %v312 = vld [vmem:[%s291 + $0x80] sm:$0xff]
        %v313 = vld [vmem:[%s291 + $0x88] sm:$0xff]
        %v314 = vld [vmem:[%s291 + $0x90] sm:$0xff]
        %v315 = vld [vmem:[%s291 + $0x98] sm:$0xff]
        %v316 = vld [vmem:[%s291 + $0xa0] sm:$0xff]
        %v317 = vld [vmem:[%s291 + $0xa8] sm:$0xff]
        %v318 = vld [vmem:[%s291 + $0xb0] sm:$0xff]
        %v319 = vld [vmem:[%s291 + $0xb8] sm:$0xff]
        %v320 = vld [vmem:[%s291 + $0xc0] sm:$0xff]
        %v321 = vld [vmem:[%s291 + $0xc8] sm:$0xff]
        %v322 = vld [vmem:[%s291 + $0xd0] sm:$0xff]
        %v323 = vld [vmem:[%s291 + $0xd8] sm:$0xff]
        %v324 = vld [vmem:[%s291 + $0xe0] sm:$0xff]
        %v325 = vld [vmem:[%s291 + $0xe8] sm:$0xff]
        %v326 = vld [vmem:[%s291 + $0xf0] sm:$0xff]
        %v327 = vld [vmem:[%s291 + $0xf8] sm:$0xff]
        %v328 = vld [vmem:[%s291 + $0x100] sm:$0xff]
        %v329 = vld [vmem:[%s291 + $0x108] sm:$0xff]
        %v330 = vld [vmem:[%s291 + $0x110] sm:$0xff]
        %v331 = vld [vmem:[%s291 + $0x118] sm:$0xff]
        %v332 = vld [vmem:[%s291 + $0x120] sm:$0xff]
        %v333 = vld [vmem:[%s291 + $0x128] sm:$0xff]
        %v334 = vld [vmem:[%s291 + $0x130] sm:$0xff]
        %v335 = vld [vmem:[%s291 + $0x138] sm:$0xff]
        %v336 = vld [vmem:[%s291 + $0x140] sm:$0xff]
        %v337 = vld [vmem:[%s291 + $0x148] sm:$0xff]
        %v338 = vld [vmem:[%s291 + $0x150] sm:$0xff]
        %v339 = vld [vmem:[%s291 + $0x158] sm:$0xff]
        %v340 = vld [vmem:[%s291 + $0x160] sm:$0xff]
        %v341 = vld [vmem:[%s291 + $0x168] sm:$0xff]
        %v342 = vld [vmem:[%s291 + $0x170] sm:$0xff]
        %v343 = vld [vmem:[%s291 + $0x178] sm:$0xff]
        %v344 = vld [vmem:[%s291 + $0x180] sm:$0xff]
        %v345 = vld [vmem:[%s291 + $0x188] sm:$0xff]
        %v346 = vld [vmem:[%s291 + $0x190] sm:$0xff]
        %v347 = vld [vmem:[%s291 + $0x198] sm:$0xff]
        %v348 = vld [vmem:[%s291 + $0x1a0] sm:$0xff]
        %v349 = vld [vmem:[%s291 + $0x1a8] sm:$0xff]
        %v350 = vld [vmem:[%s291 + $0x1b0] sm:$0xff]
        %v351 = vld [vmem:[%s291 + $0x1b8] sm:$0xff]
        %v352 = vld [vmem:[%s291 + $0x1c0] sm:$0xff]
        %v353 = vld [vmem:[%s291 + $0x1c8] sm:$0xff]
        %v354 = vld [vmem:[%s291 + $0x1d0] sm:$0xff]
        %v355 = vld [vmem:[%s291 + $0x1d8] sm:$0xff]
        %v356 = vld [vmem:[%s291 + $0x1e0] sm:$0xff]
        %v357 = vld [vmem:[%s291 + $0x1e8] sm:$0xff]
        %v358 = vld [vmem:[%s291 + $0x1f0] sm:$0xff]
        %v359 = vld [vmem:[%s291 + $0x1f8] sm:$0xff]
        %v360 = vpack.c.bf16 %v297, %v296
        %v361 = vpack.c.bf16 %v299, %v298
        %v362 = vpack.c.bf16 %v301, %v300
        %v363 = vpack.c.bf16 %v303, %v302
        %v364 = vpack.c.bf16 %v305, %v304
        %v365 = vpack.c.bf16 %v307, %v306
        %v366 = vpack.c.bf16 %v309, %v308
        %v367 = vpack.c.bf16 %v311, %v310
        %v368 = vpack.c.bf16 %v313, %v312
        %v369 = vpack.c.bf16 %v315, %v314
        %v370 = vpack.c.bf16 %v317, %v316
        %v371 = vpack.c.bf16 %v319, %v318
        %v372 = vpack.c.bf16 %v321, %v320
        %v373 = vpack.c.bf16 %v323, %v322
        %v374 = vpack.c.bf16 %v325, %v324
        %v375 = vpack.c.bf16 %v327, %v326
        %v376 = vpack.c.bf16 %v329, %v328
        %v377 = vpack.c.bf16 %v331, %v330
        %v378 = vpack.c.bf16 %v333, %v332
        %v379 = vpack.c.bf16 %v335, %v334
        %v380 = vpack.c.bf16 %v337, %v336
        %v381 = vpack.c.bf16 %v339, %v338
        %v382 = vpack.c.bf16 %v341, %v340
        %v383 = vpack.c.bf16 %v343, %v342
        %v384 = vpack.c.bf16 %v345, %v344
        %v385 = vpack.c.bf16 %v347, %v346
        %v386 = vpack.c.bf16 %v349, %v348
        %v387 = vpack.c.bf16 %v351, %v350
        %v388 = vpack.c.bf16 %v353, %v352
        %v389 = vpack.c.bf16 %v355, %v354
        %v390 = vpack.c.bf16 %v357, %v356
        %v391 = vpack.c.bf16 %v359, %v358
        %v392 = vld [vmem:[%s1] sm:$0x3]
        %v393 = vld [vmem:[%s2] sm:$0x1]
        %v395 = vperm.slane %v393, 0
        %vm397 = vcmask 23552
        %v399 = vsel %vm397, %v360, 0
        %v402 = vsel %vm397, %v361, 0
        %v405 = vsel %vm397, %v362, 0
        %v408 = vsel %vm397, %v363, 0
        %v411 = vsel %vm397, %v364, 0
        %v414 = vsel %vm397, %v365, 0
        %v417 = vsel %vm397, %v366, 0
        %v420 = vsel %vm397, %v367, 0
        %v423 = vsel %vm397, %v368, 0
        %v426 = vsel %vm397, %v369, 0
        %v429 = vsel %vm397, %v370, 0
        %v432 = vsel %vm397, %v371, 0
        %v435 = vsel %vm397, %v372, 0
        %v438 = vsel %vm397, %v373, 0
        %v441 = vsel %vm397, %v374, 0
        %v444 = vsel %vm397, %v375, 0
        %v447 = vsel %vm397, %v376, 0
        %v450 = vsel %vm397, %v377, 0
        %v453 = vsel %vm397, %v378, 0
        %v456 = vsel %vm397, %v379, 0
        %v459 = vsel %vm397, %v380, 0
        %v462 = vsel %vm397, %v381, 0
        %v465 = vsel %vm397, %v382, 0
        %v468 = vsel %vm397, %v383, 0
        %v471 = vsel %vm397, %v384, 0
        %v474 = vsel %vm397, %v385, 0
        %v477 = vsel %vm397, %v386, 0
        %v480 = vsel %vm397, %v387, 0
        %v483 = vsel %vm397, %v388, 0
        %v486 = vsel %vm397, %v389, 0
        %v489 = vsel %vm397, %v390, 0
        %v492 = vsel %vm397, %v391, 0
        %vm494 = vcmask 1040384
        %vm495 = vcmask 1041408
        %v496 = vsel %vm494, 4294967295, 65535
        %v497 = vsel %vm495, %v496, 0
        %v499 = vand.u32 %v392, %v497
        %501 = vmatpush.bf16.msra.mxu0 0
        %502 = vmatpush.bf16.msra.mxu0 0
        %503 = vmatpush.bf16.msra.mxu0 0
        %504 = vmatpush.bf16.msra.mxu0 0
        %505 = vmatpush.bf16.msra.mxu0 0
        %506 = vmatpush.bf16.msra.mxu0 0
        %507 = vmatpush.bf16.msra.mxu0 0
        %508 = vmatpush.bf16.msra.mxu0 %v499
        %509 = vmatmul.bf16.gmra.mxu0 %v399
        %v510 = vpop.f32.mrf.mxu0
        %v511 = vadd.f32 %v395, %v510
        %v512 = vpop.f32.mrf.mxu0
        %v513 = vadd.f32 %v395, %v512
        %514 = vmatmul.bf16.gmra.mxu0 %v402
        %v515 = vpop.f32.mrf.mxu0
        %v516 = vadd.f32 %v395, %v515
        %v517 = vpop.f32.mrf.mxu0
        %v518 = vadd.f32 %v395, %v517
        %519 = vmatmul.bf16.gmra.mxu0 %v405
        %v520 = vpop.f32.mrf.mxu0
        %v521 = vadd.f32 %v395, %v520
        %v522 = vpop.f32.mrf.mxu0
        %v523 = vadd.f32 %v395, %v522
        %524 = vmatmul.bf16.gmra.mxu0 %v408
        %v525 = vpop.f32.mrf.mxu0
        %v526 = vadd.f32 %v395, %v525
        %v527 = vpop.f32.mrf.mxu0
        %v528 = vadd.f32 %v395, %v527
        %529 = vmatmul.bf16.gmra.mxu0 %v411
        %v530 = vpop.f32.mrf.mxu0
        %v531 = vadd.f32 %v395, %v530
        %v532 = vpop.f32.mrf.mxu0
        %v533 = vadd.f32 %v395, %v532
        %534 = vmatmul.bf16.gmra.mxu0 %v414
        %v535 = vpop.f32.mrf.mxu0
        %v536 = vadd.f32 %v395, %v535
        %v537 = vpop.f32.mrf.mxu0
        %v538 = vadd.f32 %v395, %v537
        %539 = vmatmul.bf16.gmra.mxu0 %v417
        %v540 = vpop.f32.mrf.mxu0
        %v541 = vadd.f32 %v395, %v540
        %v542 = vpop.f32.mrf.mxu0
        %v543 = vadd.f32 %v395, %v542
        %544 = vmatmul.bf16.gmra.mxu0 %v420
        %v545 = vpop.f32.mrf.mxu0
        %v546 = vadd.f32 %v395, %v545
        %v547 = vpop.f32.mrf.mxu0
        %v548 = vadd.f32 %v395, %v547
        %549 = vmatmul.bf16.gmra.mxu0 %v423
        %v550 = vpop.f32.mrf.mxu0
        %v551 = vadd.f32 %v395, %v550
        %v552 = vpop.f32.mrf.mxu0
        %v553 = vadd.f32 %v395, %v552
        %554 = vmatmul.bf16.gmra.mxu0 %v426
        %v555 = vpop.f32.mrf.mxu0
        %v556 = vadd.f32 %v395, %v555
        %v557 = vpop.f32.mrf.mxu0
        %v558 = vadd.f32 %v395, %v557
        %559 = vmatmul.bf16.gmra.mxu0 %v429
        %v560 = vpop.f32.mrf.mxu0
        %v561 = vadd.f32 %v395, %v560
        %v562 = vpop.f32.mrf.mxu0
        %v563 = vadd.f32 %v395, %v562
        %564 = vmatmul.bf16.gmra.mxu0 %v432
        %v565 = vpop.f32.mrf.mxu0
        %v566 = vadd.f32 %v395, %v565
        %v567 = vpop.f32.mrf.mxu0
        %v568 = vadd.f32 %v395, %v567
        %569 = vmatmul.bf16.gmra.mxu0 %v435
        %v570 = vpop.f32.mrf.mxu0
        %v571 = vadd.f32 %v395, %v570
        %v572 = vpop.f32.mrf.mxu0
        %v573 = vadd.f32 %v395, %v572
        %574 = vmatmul.bf16.gmra.mxu0 %v438
        %v575 = vpop.f32.mrf.mxu0
        %v576 = vadd.f32 %v395, %v575
        %v577 = vpop.f32.mrf.mxu0
        %v578 = vadd.f32 %v395, %v577
        %579 = vmatmul.bf16.gmra.mxu0 %v441
        %v580 = vpop.f32.mrf.mxu0
        %v581 = vadd.f32 %v395, %v580
        %v582 = vpop.f32.mrf.mxu0
        %v583 = vadd.f32 %v395, %v582
        %584 = vmatmul.bf16.gmra.mxu0 %v444
        %v585 = vpop.f32.mrf.mxu0
        %v586 = vadd.f32 %v395, %v585
        %v587 = vpop.f32.mrf.mxu0
        %v588 = vadd.f32 %v395, %v587
        %589 = vmatmul.bf16.gmra.mxu0 %v447
        %v590 = vpop.f32.mrf.mxu0
        %v591 = vadd.f32 %v395, %v590
        %v592 = vpop.f32.mrf.mxu0
        %v593 = vadd.f32 %v395, %v592
        %594 = vmatmul.bf16.gmra.mxu0 %v450
        %v595 = vpop.f32.mrf.mxu0
        %v596 = vadd.f32 %v395, %v595
        %v597 = vpop.f32.mrf.mxu0
        %v598 = vadd.f32 %v395, %v597
        %599 = vmatmul.bf16.gmra.mxu0 %v453
        %v600 = vpop.f32.mrf.mxu0
        %v601 = vadd.f32 %v395, %v600
        %v602 = vpop.f32.mrf.mxu0
        %v603 = vadd.f32 %v395, %v602
        %604 = vmatmul.bf16.gmra.mxu0 %v456
        %v605 = vpop.f32.mrf.mxu0
        %v606 = vadd.f32 %v395, %v605
        %v607 = vpop.f32.mrf.mxu0
        %v608 = vadd.f32 %v395, %v607
        %609 = vmatmul.bf16.gmra.mxu0 %v459
        %v610 = vpop.f32.mrf.mxu0
        %v611 = vadd.f32 %v395, %v610
        %v612 = vpop.f32.mrf.mxu0
        %v613 = vadd.f32 %v395, %v612
        %614 = vmatmul.bf16.gmra.mxu0 %v462
        %v615 = vpop.f32.mrf.mxu0
        %v616 = vadd.f32 %v395, %v615
        %v617 = vpop.f32.mrf.mxu0
        %v618 = vadd.f32 %v395, %v617
        %619 = vmatmul.bf16.gmra.mxu0 %v465
        %v620 = vpop.f32.mrf.mxu0
        %v621 = vadd.f32 %v395, %v620
        %v622 = vpop.f32.mrf.mxu0
        %v623 = vadd.f32 %v395, %v622
        %624 = vmatmul.bf16.gmra.mxu0 %v468
        %v625 = vpop.f32.mrf.mxu0
        %v626 = vadd.f32 %v395, %v625
        %v627 = vpop.f32.mrf.mxu0
        %v628 = vadd.f32 %v395, %v627
        %629 = vmatmul.bf16.gmra.mxu0 %v471
        %v630 = vpop.f32.mrf.mxu0
        %v631 = vadd.f32 %v395, %v630
        %v632 = vpop.f32.mrf.mxu0
        %v633 = vadd.f32 %v395, %v632
        %634 = vmatmul.bf16.gmra.mxu0 %v474
        %v635 = vpop.f32.mrf.mxu0
        %v636 = vadd.f32 %v395, %v635
        %v637 = vpop.f32.mrf.mxu0
        %v638 = vadd.f32 %v395, %v637
        %639 = vmatmul.bf16.gmra.mxu0 %v477
        %v640 = vpop.f32.mrf.mxu0
        %v641 = vadd.f32 %v395, %v640
        %v642 = vpop.f32.mrf.mxu0
        %v643 = vadd.f32 %v395, %v642
        %644 = vmatmul.bf16.gmra.mxu0 %v480
        %v645 = vpop.f32.mrf.mxu0
        %v646 = vadd.f32 %v395, %v645
        %v647 = vpop.f32.mrf.mxu0
        %v648 = vadd.f32 %v395, %v647
        %649 = vmatmul.bf16.gmra.mxu0 %v483
        %v650 = vpop.f32.mrf.mxu0
        %v651 = vadd.f32 %v395, %v650
        %v652 = vpop.f32.mrf.mxu0
        %v653 = vadd.f32 %v395, %v652
        %654 = vmatmul.bf16.gmra.mxu0 %v486
        %v655 = vpop.f32.mrf.mxu0
        %v656 = vadd.f32 %v395, %v655
        %v657 = vpop.f32.mrf.mxu0
        %v658 = vadd.f32 %v395, %v657
        %659 = vmatmul.bf16.gmra.mxu0 %v489
        %v660 = vpop.f32.mrf.mxu0
        %v661 = vadd.f32 %v395, %v660
        %v662 = vpop.f32.mrf.mxu0
        %v663 = vadd.f32 %v395, %v662
        %664 = vmatmul.bf16.gmra.mxu0 %v492
        %v665 = vpop.f32.mrf.mxu0
        %v666 = vadd.f32 %v395, %v665
        %v667 = vpop.f32.mrf.mxu0
        %v668 = vadd.f32 %v395, %v667
        %669 = vdwg.mxu0
        %v670 = vmax.f32 %v511, 0.0
        %v671 = vmax.f32 %v513, 0.0
        %v672 = vmax.f32 %v516, 0.0
        %v673 = vmax.f32 %v518, 0.0
        %v674 = vmax.f32 %v521, 0.0
        %v675 = vmax.f32 %v523, 0.0
        %v676 = vmax.f32 %v526, 0.0
        %v677 = vmax.f32 %v528, 0.0
        %v678 = vmax.f32 %v531, 0.0
        %v679 = vmax.f32 %v533, 0.0
        %v680 = vmax.f32 %v536, 0.0
        %v681 = vmax.f32 %v538, 0.0
        %v682 = vmax.f32 %v541, 0.0
        %v683 = vmax.f32 %v543, 0.0
        %v684 = vmax.f32 %v546, 0.0
        %v685 = vmax.f32 %v548, 0.0
        %v686 = vmax.f32 %v551, 0.0
        %v687 = vmax.f32 %v553, 0.0
        %v688 = vmax.f32 %v556, 0.0
        %v689 = vmax.f32 %v558, 0.0
        %v690 = vmax.f32 %v561, 0.0
        %v691 = vmax.f32 %v563, 0.0
        %v692 = vmax.f32 %v566, 0.0
        %v693 = vmax.f32 %v568, 0.0
        %v694 = vmax.f32 %v571, 0.0
        %v695 = vmax.f32 %v573, 0.0
        %v696 = vmax.f32 %v576, 0.0
        %v697 = vmax.f32 %v578, 0.0
        %v698 = vmax.f32 %v581, 0.0
        %v699 = vmax.f32 %v583, 0.0
        %v700 = vmax.f32 %v586, 0.0
        %v701 = vmax.f32 %v588, 0.0
        %v702 = vmax.f32 %v591, 0.0
        %v703 = vmax.f32 %v593, 0.0
        %v704 = vmax.f32 %v596, 0.0
        %v705 = vmax.f32 %v598, 0.0
        %v706 = vmax.f32 %v601, 0.0
        %v707 = vmax.f32 %v603, 0.0
        %v708 = vmax.f32 %v606, 0.0
        %v709 = vmax.f32 %v608, 0.0
        %v710 = vmax.f32 %v611, 0.0
        %v711 = vmax.f32 %v613, 0.0
        %v712 = vmax.f32 %v616, 0.0
        %v713 = vmax.f32 %v618, 0.0
        %v714 = vmax.f32 %v621, 0.0
        %v715 = vmax.f32 %v623, 0.0
        %v716 = vmax.f32 %v626, 0.0
        %v717 = vmax.f32 %v628, 0.0
        %v718 = vmax.f32 %v631, 0.0
        %v719 = vmax.f32 %v633, 0.0
        %v720 = vmax.f32 %v636, 0.0
        %v721 = vmax.f32 %v638, 0.0
        %v722 = vmax.f32 %v641, 0.0
        %v723 = vmax.f32 %v643, 0.0
        %v724 = vmax.f32 %v646, 0.0
        %v725 = vmax.f32 %v648, 0.0
        %v726 = vmax.f32 %v651, 0.0
        %v727 = vmax.f32 %v653, 0.0
        %v728 = vmax.f32 %v656, 0.0
        %v729 = vmax.f32 %v658, 0.0
        %v730 = vmax.f32 %v661, 0.0
        %v731 = vmax.f32 %v663, 0.0
        %v732 = vmax.f32 %v666, 0.0
        %v733 = vmax.f32 %v668, 0.0
        %v734 = vpack.c.bf16 %v671, %v670
        %v735 = vpack.c.bf16 %v673, %v672
        %v736 = vpack.c.bf16 %v675, %v674
        %v737 = vpack.c.bf16 %v677, %v676
        %v738 = vpack.c.bf16 %v679, %v678
        %v739 = vpack.c.bf16 %v681, %v680
        %v740 = vpack.c.bf16 %v683, %v682
        %v741 = vpack.c.bf16 %v685, %v684
        %v742 = vpack.c.bf16 %v687, %v686
        %v743 = vpack.c.bf16 %v689, %v688
        %v744 = vpack.c.bf16 %v691, %v690
        %v745 = vpack.c.bf16 %v693, %v692
        %v746 = vpack.c.bf16 %v695, %v694
        %v747 = vpack.c.bf16 %v697, %v696
        %v748 = vpack.c.bf16 %v699, %v698
        %v749 = vpack.c.bf16 %v701, %v700
        %v750 = vpack.c.bf16 %v703, %v702
        %v751 = vpack.c.bf16 %v705, %v704
        %v752 = vpack.c.bf16 %v707, %v706
        %v753 = vpack.c.bf16 %v709, %v708
        %v754 = vpack.c.bf16 %v711, %v710
        %v755 = vpack.c.bf16 %v713, %v712
        %v756 = vpack.c.bf16 %v715, %v714
        %v757 = vpack.c.bf16 %v717, %v716
        %v758 = vpack.c.bf16 %v719, %v718
        %v759 = vpack.c.bf16 %v721, %v720
        %v760 = vpack.c.bf16 %v723, %v722
        %v761 = vpack.c.bf16 %v725, %v724
        %v762 = vpack.c.bf16 %v727, %v726
        %v763 = vpack.c.bf16 %v729, %v728
        %v764 = vpack.c.bf16 %v731, %v730
        %v765 = vpack.c.bf16 %v733, %v732
        %v766 = vld [vmem:[%s3] sm:$0xf]
        %v767 = vld [vmem:[%s3 + $0x4] sm:$0xf]
        %v768 = vld [vmem:[%s3 + $0x8] sm:$0xf]
        %v769 = vld [vmem:[%s3 + $0xc] sm:$0xf]
        %v770 = vld [vmem:[%s3 + $0x10] sm:$0xf]
        %v771 = vld [vmem:[%s3 + $0x14] sm:$0xf]
        %v772 = vld [vmem:[%s3 + $0x18] sm:$0xf]
        %v773 = vld [vmem:[%s3 + $0x1c] sm:$0xf]
        %v774 = vld [vmem:[%s3 + $0x20] sm:$0xf]
        %v775 = vld [vmem:[%s3 + $0x24] sm:$0xf]
        %v776 = vld [vmem:[%s3 + $0x28] sm:$0xf]
        %v777 = vld [vmem:[%s3 + $0x2c] sm:$0xf]
        %v778 = vld [vmem:[%s3 + $0x30] sm:$0xf]
        %v779 = vld [vmem:[%s3 + $0x34] sm:$0xf]
        %v780 = vld [vmem:[%s3 + $0x38] sm:$0xf]
        %v781 = vld [vmem:[%s3 + $0x3c] sm:$0xf]
        %v782 = vld [vmem:[%s4] sm:$0x1]
        %v784 = vperm.slane %v782, 0
        %v802 = vunpack.c.l.b16 %v766
        %v803 = vunpack.c.l.b16 %v767
        %v804 = vunpack.c.l.b16 %v768
        %v805 = vunpack.c.l.b16 %v769
        %v806 = vunpack.c.l.b16 %v770
        %v807 = vunpack.c.l.b16 %v771
        %v808 = vunpack.c.l.b16 %v772
        %v809 = vunpack.c.l.b16 %v773
        %v810 = vunpack.c.l.b16 %v774
        %v811 = vunpack.c.l.b16 %v775
        %v812 = vunpack.c.l.b16 %v776
        %v813 = vunpack.c.l.b16 %v777
        %v814 = vunpack.c.l.b16 %v778
        %v815 = vunpack.c.l.b16 %v779
        %v816 = vunpack.c.l.b16 %v780
        %v817 = vunpack.c.l.b16 %v781
        %v818 = vpack.c.b16 %v803, %v802
        %v819 = vpack.c.b16 %v805, %v804
        %v820 = vpack.c.b16 %v807, %v806
        %v821 = vpack.c.b16 %v809, %v808
        %v822 = vpack.c.b16 %v811, %v810
        %v823 = vpack.c.b16 %v813, %v812
        %v824 = vpack.c.b16 %v815, %v814
        %v825 = vpack.c.b16 %v817, %v816
        %834 = vmatpush.bf16.msra.mxu0 %v825
        %835 = vmatpush.bf16.msra.mxu0 %v824
        %836 = vmatpush.bf16.msra.mxu0 %v823
        %837 = vmatpush.bf16.msra.mxu0 %v822
        %838 = vmatpush.bf16.msra.mxu0 %v821
        %839 = vmatpush.bf16.msra.mxu0 %v820
        %840 = vmatpush.bf16.msra.mxu0 %v819
        %841 = vmatpush.bf16.msra.mxu0 %v818
        %842 = vmatmul.bf16.gmra.mxu0 %v734
        %v843 = vpop.f32.mrf.mxu0
        %v844 = vadd.f32 %v784, %v843
        %v845 = vpop.f32.mrf.mxu0
        %v846 = vadd.f32 %v784, %v845
        %847 = vmatmul.bf16.gmra.mxu0 %v735
        %v848 = vpop.f32.mrf.mxu0
        %v849 = vadd.f32 %v784, %v848
        %v850 = vpop.f32.mrf.mxu0
        %v851 = vadd.f32 %v784, %v850
        %852 = vmatmul.bf16.gmra.mxu0 %v736
        %v853 = vpop.f32.mrf.mxu0
        %v854 = vadd.f32 %v784, %v853
        %v855 = vpop.f32.mrf.mxu0
        %v856 = vadd.f32 %v784, %v855
        %857 = vmatmul.bf16.gmra.mxu0 %v737
        %v858 = vpop.f32.mrf.mxu0
        %v859 = vadd.f32 %v784, %v858
        %v860 = vpop.f32.mrf.mxu0
        %v861 = vadd.f32 %v784, %v860
        %862 = vmatmul.bf16.gmra.mxu0 %v738
        %v863 = vpop.f32.mrf.mxu0
        %v864 = vadd.f32 %v784, %v863
        %v865 = vpop.f32.mrf.mxu0
        %v866 = vadd.f32 %v784, %v865
        %867 = vmatmul.bf16.gmra.mxu0 %v739
        %v868 = vpop.f32.mrf.mxu0
        %v869 = vadd.f32 %v784, %v868
        %v870 = vpop.f32.mrf.mxu0
        %v871 = vadd.f32 %v784, %v870
        %872 = vmatmul.bf16.gmra.mxu0 %v740
        %v873 = vpop.f32.mrf.mxu0
        %v874 = vadd.f32 %v784, %v873
        %v875 = vpop.f32.mrf.mxu0
        %v876 = vadd.f32 %v784, %v875
        %877 = vmatmul.bf16.gmra.mxu0 %v741
        %v878 = vpop.f32.mrf.mxu0
        %v879 = vadd.f32 %v784, %v878
        %v880 = vpop.f32.mrf.mxu0
        %v881 = vadd.f32 %v784, %v880
        %882 = vmatmul.bf16.gmra.mxu0 %v742
        %v883 = vpop.f32.mrf.mxu0
        %v884 = vadd.f32 %v784, %v883
        %v885 = vpop.f32.mrf.mxu0
        %v886 = vadd.f32 %v784, %v885
        %887 = vmatmul.bf16.gmra.mxu0 %v743
        %v888 = vpop.f32.mrf.mxu0
        %v889 = vadd.f32 %v784, %v888
        %v890 = vpop.f32.mrf.mxu0
        %v891 = vadd.f32 %v784, %v890
        %892 = vmatmul.bf16.gmra.mxu0 %v744
        %v893 = vpop.f32.mrf.mxu0
        %v894 = vadd.f32 %v784, %v893
        %v895 = vpop.f32.mrf.mxu0
        %v896 = vadd.f32 %v784, %v895
        %897 = vmatmul.bf16.gmra.mxu0 %v745
        %v898 = vpop.f32.mrf.mxu0
        %v899 = vadd.f32 %v784, %v898
        %v900 = vpop.f32.mrf.mxu0
        %v901 = vadd.f32 %v784, %v900
        %902 = vmatmul.bf16.gmra.mxu0 %v746
        %v903 = vpop.f32.mrf.mxu0
        %v904 = vadd.f32 %v784, %v903
        %v905 = vpop.f32.mrf.mxu0
        %v906 = vadd.f32 %v784, %v905
        %907 = vmatmul.bf16.gmra.mxu0 %v747
        %v908 = vpop.f32.mrf.mxu0
        %v909 = vadd.f32 %v784, %v908
        %v910 = vpop.f32.mrf.mxu0
        %v911 = vadd.f32 %v784, %v910
        %912 = vmatmul.bf16.gmra.mxu0 %v748
        %v913 = vpop.f32.mrf.mxu0
        %v914 = vadd.f32 %v784, %v913
        %v915 = vpop.f32.mrf.mxu0
        %v916 = vadd.f32 %v784, %v915
        %917 = vmatmul.bf16.gmra.mxu0 %v749
        %v918 = vpop.f32.mrf.mxu0
        %v919 = vadd.f32 %v784, %v918
        %v920 = vpop.f32.mrf.mxu0
        %v921 = vadd.f32 %v784, %v920
        %922 = vmatmul.bf16.gmra.mxu0 %v750
        %v923 = vpop.f32.mrf.mxu0
        %v924 = vadd.f32 %v784, %v923
        %v925 = vpop.f32.mrf.mxu0
        %v926 = vadd.f32 %v784, %v925
        %927 = vmatmul.bf16.gmra.mxu0 %v751
        %v928 = vpop.f32.mrf.mxu0
        %v929 = vadd.f32 %v784, %v928
        %v930 = vpop.f32.mrf.mxu0
        %v931 = vadd.f32 %v784, %v930
        %932 = vmatmul.bf16.gmra.mxu0 %v752
        %v933 = vpop.f32.mrf.mxu0
        %v934 = vadd.f32 %v784, %v933
        %v935 = vpop.f32.mrf.mxu0
        %v936 = vadd.f32 %v784, %v935
        %937 = vmatmul.bf16.gmra.mxu0 %v753
        %v938 = vpop.f32.mrf.mxu0
        %v939 = vadd.f32 %v784, %v938
        %v940 = vpop.f32.mrf.mxu0
        %v941 = vadd.f32 %v784, %v940
        %942 = vmatmul.bf16.gmra.mxu0 %v754
        %v943 = vpop.f32.mrf.mxu0
        %v944 = vadd.f32 %v784, %v943
        %v945 = vpop.f32.mrf.mxu0
        %v946 = vadd.f32 %v784, %v945
        %947 = vmatmul.bf16.gmra.mxu0 %v755
        %v948 = vpop.f32.mrf.mxu0
        %v949 = vadd.f32 %v784, %v948
        %v950 = vpop.f32.mrf.mxu0
        %v951 = vadd.f32 %v784, %v950
        %952 = vmatmul.bf16.gmra.mxu0 %v756
        %v953 = vpop.f32.mrf.mxu0
        %v954 = vadd.f32 %v784, %v953
        %v955 = vpop.f32.mrf.mxu0
        %v956 = vadd.f32 %v784, %v955
        %957 = vmatmul.bf16.gmra.mxu0 %v757
        %v958 = vpop.f32.mrf.mxu0
        %v959 = vadd.f32 %v784, %v958
        %v960 = vpop.f32.mrf.mxu0
        %v961 = vadd.f32 %v784, %v960
        %962 = vmatmul.bf16.gmra.mxu0 %v758
        %v963 = vpop.f32.mrf.mxu0
        %v964 = vadd.f32 %v784, %v963
        %v965 = vpop.f32.mrf.mxu0
        %v966 = vadd.f32 %v784, %v965
        %967 = vmatmul.bf16.gmra.mxu0 %v759
        %v968 = vpop.f32.mrf.mxu0
        %v969 = vadd.f32 %v784, %v968
        %v970 = vpop.f32.mrf.mxu0
        %v971 = vadd.f32 %v784, %v970
        %972 = vmatmul.bf16.gmra.mxu0 %v760
        %v973 = vpop.f32.mrf.mxu0
        %v974 = vadd.f32 %v784, %v973
        %v975 = vpop.f32.mrf.mxu0
        %v976 = vadd.f32 %v784, %v975
        %977 = vmatmul.bf16.gmra.mxu0 %v761
        %v978 = vpop.f32.mrf.mxu0
        %v979 = vadd.f32 %v784, %v978
        %v980 = vpop.f32.mrf.mxu0
        %v981 = vadd.f32 %v784, %v980
        %982 = vmatmul.bf16.gmra.mxu0 %v762
        %v983 = vpop.f32.mrf.mxu0
        %v984 = vadd.f32 %v784, %v983
        %v985 = vpop.f32.mrf.mxu0
        %v986 = vadd.f32 %v784, %v985
        %987 = vmatmul.bf16.gmra.mxu0 %v763
        %v988 = vpop.f32.mrf.mxu0
        %v989 = vadd.f32 %v784, %v988
        %v990 = vpop.f32.mrf.mxu0
        %v991 = vadd.f32 %v784, %v990
        %992 = vmatmul.bf16.gmra.mxu0 %v764
        %v993 = vpop.f32.mrf.mxu0
        %v994 = vadd.f32 %v784, %v993
        %v995 = vpop.f32.mrf.mxu0
        %v996 = vadd.f32 %v784, %v995
        %997 = vmatmul.bf16.gmra.mxu0 %v765
        %v998 = vpop.f32.mrf.mxu0
        %v999 = vadd.f32 %v784, %v998
        %v1000 = vpop.f32.mrf.mxu0
        %v1001 = vadd.f32 %v784, %v1000
        %1002 = vdwg.mxu0
        %1003 = vst [vmem:[%s275] sm:$0xff] %v670
        %1004 = vst [vmem:[%s275 + $0x8] sm:$0xff] %v671
        %1005 = vst [vmem:[%s275 + $0x10] sm:$0xff] %v672
        %1006 = vst [vmem:[%s275 + $0x18] sm:$0xff] %v673
        %1007 = vst [vmem:[%s275 + $0x20] sm:$0xff] %v674
        %1008 = vst [vmem:[%s275 + $0x28] sm:$0xff] %v675
        %1009 = vst [vmem:[%s275 + $0x30] sm:$0xff] %v676
        %1010 = vst [vmem:[%s275 + $0x38] sm:$0xff] %v677
        %1011 = vst [vmem:[%s275 + $0x40] sm:$0xff] %v678
        %1012 = vst [vmem:[%s275 + $0x48] sm:$0xff] %v679
        %1013 = vst [vmem:[%s275 + $0x50] sm:$0xff] %v680
        %1014 = vst [vmem:[%s275 + $0x58] sm:$0xff] %v681
        %1015 = vst [vmem:[%s275 + $0x60] sm:$0xff] %v682
        %1016 = vst [vmem:[%s275 + $0x68] sm:$0xff] %v683
        %1017 = vst [vmem:[%s275 + $0x70] sm:$0xff] %v684
        %1018 = vst [vmem:[%s275 + $0x78] sm:$0xff] %v685
        %1019 = vst [vmem:[%s275 + $0x80] sm:$0xff] %v686
        %1020 = vst [vmem:[%s275 + $0x88] sm:$0xff] %v687
        %1021 = vst [vmem:[%s275 + $0x90] sm:$0xff] %v688
        %1022 = vst [vmem:[%s275 + $0x98] sm:$0xff] %v689
        %1023 = vst [vmem:[%s275 + $0xa0] sm:$0xff] %v690
        %1024 = vst [vmem:[%s275 + $0xa8] sm:$0xff] %v691
        %1025 = vst [vmem:[%s275 + $0xb0] sm:$0xff] %v692
        %1026 = vst [vmem:[%s275 + $0xb8] sm:$0xff] %v693
        %1027 = vst [vmem:[%s275 + $0xc0] sm:$0xff] %v694
        %1028 = vst [vmem:[%s275 + $0xc8] sm:$0xff] %v695
        %1029 = vst [vmem:[%s275 + $0xd0] sm:$0xff] %v696
        %1030 = vst [vmem:[%s275 + $0xd8] sm:$0xff] %v697
        %1031 = vst [vmem:[%s275 + $0xe0] sm:$0xff] %v698
        %1032 = vst [vmem:[%s275 + $0xe8] sm:$0xff] %v699
        %1033 = vst [vmem:[%s275 + $0xf0] sm:$0xff] %v700
        %1034 = vst [vmem:[%s275 + $0xf8] sm:$0xff] %v701
        %1035 = vst [vmem:[%s275 + $0x100] sm:$0xff] %v702
        %1036 = vst [vmem:[%s275 + $0x108] sm:$0xff] %v703
        %1037 = vst [vmem:[%s275 + $0x110] sm:$0xff] %v704
        %1038 = vst [vmem:[%s275 + $0x118] sm:$0xff] %v705
        %1039 = vst [vmem:[%s275 + $0x120] sm:$0xff] %v706
        %1040 = vst [vmem:[%s275 + $0x128] sm:$0xff] %v707
        %1041 = vst [vmem:[%s275 + $0x130] sm:$0xff] %v708
        %1042 = vst [vmem:[%s275 + $0x138] sm:$0xff] %v709
        %1043 = vst [vmem:[%s275 + $0x140] sm:$0xff] %v710
        %1044 = vst [vmem:[%s275 + $0x148] sm:$0xff] %v711
        %1045 = vst [vmem:[%s275 + $0x150] sm:$0xff] %v712
        %1046 = vst [vmem:[%s275 + $0x158] sm:$0xff] %v713
        %1047 = vst [vmem:[%s275 + $0x160] sm:$0xff] %v714
        %1048 = vst [vmem:[%s275 + $0x168] sm:$0xff] %v715
        %1049 = vst [vmem:[%s275 + $0x170] sm:$0xff] %v716
        %1050 = vst [vmem:[%s275 + $0x178] sm:$0xff] %v717
        %1051 = vst [vmem:[%s275 + $0x180] sm:$0xff] %v718
        %1052 = vst [vmem:[%s275 + $0x188] sm:$0xff] %v719
        %1053 = vst [vmem:[%s275 + $0x190] sm:$0xff] %v720
        %1054 = vst [vmem:[%s275 + $0x198] sm:$0xff] %v721
        %1055 = vst [vmem:[%s275 + $0x1a0] sm:$0xff] %v722
        %1056 = vst [vmem:[%s275 + $0x1a8] sm:$0xff] %v723
        %1057 = vst [vmem:[%s275 + $0x1b0] sm:$0xff] %v724
        %1058 = vst [vmem:[%s275 + $0x1b8] sm:$0xff] %v725
        %1059 = vst [vmem:[%s275 + $0x1c0] sm:$0xff] %v726
        %1060 = vst [vmem:[%s275 + $0x1c8] sm:$0xff] %v727
        %1061 = vst [vmem:[%s275 + $0x1d0] sm:$0xff] %v728
        %1062 = vst [vmem:[%s275 + $0x1d8] sm:$0xff] %v729
        %1063 = vst [vmem:[%s275 + $0x1e0] sm:$0xff] %v730
        %1064 = vst [vmem:[%s275 + $0x1e8] sm:$0xff] %v731
        %1065 = vst [vmem:[%s275 + $0x1f0] sm:$0xff] %v732
        %1066 = vst [vmem:[%s275 + $0x1f8] sm:$0xff] %v733
        %1067 = vst [vmem:[%s282] sm:$0xff] %v844
        %1068 = vst [vmem:[%s282 + $0x8] sm:$0xff] %v846
        %1069 = vst [vmem:[%s282 + $0x10] sm:$0xff] %v849
        %1070 = vst [vmem:[%s282 + $0x18] sm:$0xff] %v851
        %1071 = vst [vmem:[%s282 + $0x20] sm:$0xff] %v854
        %1072 = vst [vmem:[%s282 + $0x28] sm:$0xff] %v856
        %1073 = vst [vmem:[%s282 + $0x30] sm:$0xff] %v859
        %1074 = vst [vmem:[%s282 + $0x38] sm:$0xff] %v861
        %1075 = vst [vmem:[%s282 + $0x40] sm:$0xff] %v864
        %1076 = vst [vmem:[%s282 + $0x48] sm:$0xff] %v866
        %1077 = vst [vmem:[%s282 + $0x50] sm:$0xff] %v869
        %1078 = vst [vmem:[%s282 + $0x58] sm:$0xff] %v871
        %1079 = vst [vmem:[%s282 + $0x60] sm:$0xff] %v874
        %1080 = vst [vmem:[%s282 + $0x68] sm:$0xff] %v876
        %1081 = vst [vmem:[%s282 + $0x70] sm:$0xff] %v879
        %1082 = vst [vmem:[%s282 + $0x78] sm:$0xff] %v881
        %1083 = vst [vmem:[%s282 + $0x80] sm:$0xff] %v884
        %1084 = vst [vmem:[%s282 + $0x88] sm:$0xff] %v886
        %1085 = vst [vmem:[%s282 + $0x90] sm:$0xff] %v889
        %1086 = vst [vmem:[%s282 + $0x98] sm:$0xff] %v891
        %1087 = vst [vmem:[%s282 + $0xa0] sm:$0xff] %v894
        %1088 = vst [vmem:[%s282 + $0xa8] sm:$0xff] %v896
        %1089 = vst [vmem:[%s282 + $0xb0] sm:$0xff] %v899
        %1090 = vst [vmem:[%s282 + $0xb8] sm:$0xff] %v901
        %1091 = vst [vmem:[%s282 + $0xc0] sm:$0xff] %v904
        %1092 = vst [vmem:[%s282 + $0xc8] sm:$0xff] %v906
        %1093 = vst [vmem:[%s282 + $0xd0] sm:$0xff] %v909
        %1094 = vst [vmem:[%s282 + $0xd8] sm:$0xff] %v911
        %1095 = vst [vmem:[%s282 + $0xe0] sm:$0xff] %v914
        %1096 = vst [vmem:[%s282 + $0xe8] sm:$0xff] %v916
        %1097 = vst [vmem:[%s282 + $0xf0] sm:$0xff] %v919
        %1098 = vst [vmem:[%s282 + $0xf8] sm:$0xff] %v921
        %1099 = vst [vmem:[%s282 + $0x100] sm:$0xff] %v924
        %1100 = vst [vmem:[%s282 + $0x108] sm:$0xff] %v926
        %1101 = vst [vmem:[%s282 + $0x110] sm:$0xff] %v929
        %1102 = vst [vmem:[%s282 + $0x118] sm:$0xff] %v931
        %1103 = vst [vmem:[%s282 + $0x120] sm:$0xff] %v934
        %1104 = vst [vmem:[%s282 + $0x128] sm:$0xff] %v936
        %1105 = vst [vmem:[%s282 + $0x130] sm:$0xff] %v939
        %1106 = vst [vmem:[%s282 + $0x138] sm:$0xff] %v941
        %1107 = vst [vmem:[%s282 + $0x140] sm:$0xff] %v944
        %1108 = vst [vmem:[%s282 + $0x148] sm:$0xff] %v946
        %1109 = vst [vmem:[%s282 + $0x150] sm:$0xff] %v949
        %1110 = vst [vmem:[%s282 + $0x158] sm:$0xff] %v951
        %1111 = vst [vmem:[%s282 + $0x160] sm:$0xff] %v954
        %1112 = vst [vmem:[%s282 + $0x168] sm:$0xff] %v956
        %1113 = vst [vmem:[%s282 + $0x170] sm:$0xff] %v959
        %1114 = vst [vmem:[%s282 + $0x178] sm:$0xff] %v961
        %1115 = vst [vmem:[%s282 + $0x180] sm:$0xff] %v964
        %1116 = vst [vmem:[%s282 + $0x188] sm:$0xff] %v966
        %1117 = vst [vmem:[%s282 + $0x190] sm:$0xff] %v969
        %1118 = vst [vmem:[%s282 + $0x198] sm:$0xff] %v971
        %1119 = vst [vmem:[%s282 + $0x1a0] sm:$0xff] %v974
        %1120 = vst [vmem:[%s282 + $0x1a8] sm:$0xff] %v976
        %1121 = vst [vmem:[%s282 + $0x1b0] sm:$0xff] %v979
        %1122 = vst [vmem:[%s282 + $0x1b8] sm:$0xff] %v981
        %1123 = vst [vmem:[%s282 + $0x1c0] sm:$0xff] %v984
        %1124 = vst [vmem:[%s282 + $0x1c8] sm:$0xff] %v986
        %1125 = vst [vmem:[%s282 + $0x1d0] sm:$0xff] %v989
        %1126 = vst [vmem:[%s282 + $0x1d8] sm:$0xff] %v991
        %1127 = vst [vmem:[%s282 + $0x1e0] sm:$0xff] %v994
        %1128 = vst [vmem:[%s282 + $0x1e8] sm:$0xff] %v996
        %1129 = vst [vmem:[%s282 + $0x1f0] sm:$0xff] %v999
        %1130 = vst [vmem:[%s282 + $0x1f8] sm:$0xff] %v1001
        %s1131 = sand.u32 %s158, 1
        %s1132 = scalar_lea.sflag [#allocation3], %s1131
        %s1133 = sand.u32 %s158, 1
        %s1134 = smul.addr %s1133, 512
        %s1135 = scalar_lea.vmem [#allocation2], %s1134
        %s1136 = sand.u32 %s186, 1
        %s1137 = scalar_lea.sflag [#allocation5], %s1136
        %s1138 = sand.u32 %s186, 1
        %s1139 = smul.addr %s1138, 512
        %s1140 = scalar_lea.vmem [#allocation4], %s1139
        // Predicated region
        $region41: #{tpu_custom_call.1} parent=39 // pred_check
          %p1141 = pneg %p168
        $region42: #{tpu_custom_call.1} parent=39 // pred_check_branch
          %1143 = sbr.rel (%p1141) target = $region44
        $region43: #{tpu_custom_call.1} parent=39 // pred_region
          %s1144 = smul.u32 64, %s29
          %1146 = vsyncadd %s1132, 0
          %s1147 = smul.addr %s28, 64
          %s1148 = sadd.s32 %s1144, %s1147
          %s1149 = smul.addr %s1148, 8
          %s1150 = scalar_lea.hbm %s5, %s1149
          %s1151 = sshll.u32 %s1135, 4
          %s1152 = int_to_ptr.vmem [resolvable:$true] %s1151
          %s1153 = sshll.u32 %s1150, 4
          %s1154 = int_to_ptr.hbm [resolvable:$true] %s1153
          %1159 = dma.vmem_to_hbm [thread:$0]  %s1152, 8192, %s1154, %s1132, 128, 128, 8
        $region44: #{tpu_custom_call.1} parent=39 // pred_fallthru
          _
        // Predicated region
        $region45: #{tpu_custom_call.1} parent=39 // pred_check
          %p1160 = pneg %p196
        $region46: #{tpu_custom_call.1} parent=39 // pred_check_branch
          %1162 = sbr.rel (%p1160) target = $region48
        $region47: #{tpu_custom_call.1} parent=39 // pred_region
          %s1163 = smul.u32 64, %s29
          %1165 = vsyncadd %s1137, 0
          %s1166 = smul.addr %s28, 64
          %s1167 = sadd.s32 %s1163, %s1166
          %s1168 = smul.addr %s1167, 8
          %s1169 = scalar_lea.hbm %s6, %s1168
          %s1170 = sshll.u32 %s1140, 4
          %s1171 = int_to_ptr.vmem [resolvable:$true] %s1170
          %s1172 = sshll.u32 %s1169, 4
          %s1173 = int_to_ptr.hbm [resolvable:$true] %s1172
          %1178 = dma.vmem_to_hbm [thread:$0]  %s1171, 8192, %s1173, %s1137, 128, 128, 8
        $region48: #{tpu_custom_call.1} parent=39 // pred_fallthru
          _
      $region40: #{tpu_custom_call.1} parent=5 // pred_fallthru
        _
      %p1179 = scmp.le.s32.totalorder 2, %s19
      // Predicated region
      $region49: #{tpu_custom_call.1} parent=5 // pred_check
        %p1180 = pneg %p1179
      $region50: #{tpu_custom_call.1} parent=5 // pred_check_branch
        %1182 = sbr.rel (%p1180) target = $region52
      $region51: #{tpu_custom_call.1} parent=5 // pred_region
        %s1183 = ssub.s32 %s19, 2
        // Predicated region
        $region53: #{tpu_custom_call.1} parent=51 // pred_check
          %p1184 = pneg %p174
        $region54: #{tpu_custom_call.1} parent=51 // pred_check_branch
          %1186 = sbr.rel (%p1184) target = $region56
        $region55: #{tpu_custom_call.1} parent=51 // pred_region
          %s1187 = sand.u32 %s159, 1
          %s1188 = scalar_lea.sflag [#allocation3], %s1187
          %s1189 = sand.u32 %s159, 1
          %s1190 = smul.addr %s1189, 512
          %s1191 = scalar_lea.vmem [#allocation2], %s1190
          %1193 = dma.done %s1188, 8192
        $region56: #{tpu_custom_call.1} parent=51 // pred_fallthru
          _
        // Predicated region
        $region57: #{tpu_custom_call.1} parent=51 // pred_check
          %p1194 = pneg %p202
        $region58: #{tpu_custom_call.1} parent=51 // pred_check_branch
          %1196 = sbr.rel (%p1194) target = $region60
        $region59: #{tpu_custom_call.1} parent=51 // pred_region
          %s1197 = sand.u32 %s187, 1
          %s1198 = scalar_lea.sflag [#allocation5], %s1197
          %s1199 = sand.u32 %s187, 1
          %s1200 = smul.addr %s1199, 512
          %s1201 = scalar_lea.vmem [#allocation4], %s1200
          %1203 = dma.done %s1198, 8192
        $region60: #{tpu_custom_call.1} parent=51 // pred_fallthru
          _
      $region52: #{tpu_custom_call.1} parent=5 // pred_fallthru
        _
    $region6: #{tpu_custom_call.1} parent=1 // loop_footer
      %s23 = sadd.s32 1, %s19
    $region7: #{tpu_custom_call.1} parent=1 // loop_footer_branch
      %18 = sbr.rel target = $region3
    $region8: #{tpu_custom_call.1} parent=1 // loop_exit
      _
    %1204 = vsyncpa [#allocation3], 1
    %s1205 = scalar_lea.sflag [#allocation3], 1
    %1206 = vsyncpa %s1205, 1
    %1207 = vsyncpa [#allocation5], 1
    %s1208 = scalar_lea.sflag [#allocation5], 1
    %1209 = vsyncpa %s1208, 1

</llo_original>
